<compile_context>
chip_gen: v7x
topology: tpu7x:2x2x1
jax: 0.10.0
libtpu: 0.0.40
codegen_flags: <defaults>
</compile_context>

<pallas_src>
import functools

import jax
import jax.numpy as jnp
from jax.experimental import pallas as pl
from jax.experimental.pallas import tpu as pltpu


_VMEM_LIMIT = 32 * 1024 * 1024  # explicit scoped-VMEM limit; safe on v5e/v6e/v7x


def _round_up(v, m):
    return (v + m - 1) // m * m


# ----------------------------- Pallas kernels -----------------------------

def _matmul_bn_act_kernel(x_ref, w_ref, scale_ref, shift_ref, o_ref, *, relu6):
    y = jnp.dot(x_ref[...], w_ref[...], preferred_element_type=jnp.float32)
    y = y * scale_ref[...] + shift_ref[...]
    if relu6:
        y = jnp.clip(y, 0.0, 6.0)
    o_ref[...] = y.astype(o_ref.dtype)


def _matmul_bn_act_res_kernel(x_ref, w_ref, scale_ref, shift_ref, r_ref, o_ref,
                              *, relu6):
    y = jnp.dot(x_ref[...], w_ref[...], preferred_element_type=jnp.float32)
    y = y * scale_ref[...] + shift_ref[...]
    if relu6:
        y = jnp.clip(y, 0.0, 6.0)
    y = y + r_ref[...].astype(jnp.float32)          # fused residual add
    o_ref[...] = y.astype(o_ref.dtype)


def matmul_bn_act(x2d, w, scale, shift, res=None, *, relu6,
                  out_dtype=jnp.bfloat16):
    """(M,K)@(K,N) + BN scale/shift + optional ReLU6 (+ residual), M-tiled."""
    M, K = x2d.shape
    N = w.shape[1]
    TM = min(512, _round_up(M, 8))
    Mp = _round_up(M, TM)

    x2d = x2d.astype(jnp.bfloat16)
    if res is not None:
        res = res.astype(jnp.bfloat16)
    if Mp != M:
        x2d = jnp.pad(x2d, ((0, Mp - M), (0, 0)))
        if res is not None:
            res = jnp.pad(res, ((0, Mp - M), (0, 0)))

    in_specs = [
        pl.BlockSpec((TM, K), lambda i: (i, 0)),
        pl.BlockSpec((K, N), lambda i: (0, 0)),
        pl.BlockSpec((1, N), lambda i: (0, 0)),
        pl.BlockSpec((1, N), lambda i: (0, 0)),
    ]
    args = [x2d, w.astype(jnp.bfloat16), scale, shift]
    if res is None:
        kern = functools.partial(_matmul_bn_act_kernel, relu6=relu6)
    else:
        kern = functools.partial(_matmul_bn_act_res_kernel, relu6=relu6)
        in_specs.append(pl.BlockSpec((TM, N), lambda i: (i, 0)))
        args.append(res)

    out = pl.pallas_call(
        kern,
        grid=(Mp // TM,),
        in_specs=in_specs,
        out_specs=pl.BlockSpec((TM, N), lambda i: (i, 0)),
        out_shape=jax.ShapeDtypeStruct((Mp, N), out_dtype),
        compiler_params=pltpu.CompilerParams(
            dimension_semantics=("parallel",),
            vmem_limit_bytes=_VMEM_LIMIT),
        cost_estimate=pl.CostEstimate(
            flops=2 * Mp * K * N,
            transcendentals=0,
            bytes_accessed=2 * (Mp * K + K * N + Mp * N)),
    )(*args)
    if Mp != M:
        out = out[:M]
    return out


def _dw3x3_s1_kernel(xpad_ref, w_ref, scale_ref, shift_ref, o_ref):
    _, Ho, Wo, C = o_ref.shape
    w = w_ref[...].astype(jnp.float32)                     # (9, C), loaded once
    acc = jnp.zeros((1, Ho, Wo, C), jnp.float32)
    for dh in range(3):
        for dw in range(3):
            tap = xpad_ref[:, dh:dh + Ho, dw:dw + Wo, :].astype(jnp.float32)
            acc = acc + tap * w[3 * dh + dw].reshape(1, 1, 1, C)
    y = acc * scale_ref[...].reshape(1, 1, 1, C) + shift_ref[...].reshape(1, 1, 1, C)
    o_ref[...] = jnp.clip(y, 0.0, 6.0).astype(o_ref.dtype)


def _dw3x3_s2_kernel(p00_ref, p01_ref, p10_ref, p11_ref, w_ref, scale_ref,
                     shift_ref, o_ref):
    # out[i,j] = sum_{dh,dw} xpad[2i+dh, 2j+dw] * w[3dh+dw]
    # phase (dh%2, dw%2) holds xpad[parity rows/cols]; shift = (dh//2, dw//2).
    _, Ho, Wo, C = o_ref.shape
    w = w_ref[...].astype(jnp.float32)
    phases = ((p00_ref, p01_ref), (p10_ref, p11_ref))
    acc = jnp.zeros((1, Ho, Wo, C), jnp.float32)
    for dh in range(3):
        for dw in range(3):
            ph = phases[dh % 2][dw % 2]
            sh, sw = dh // 2, dw // 2
            tap = ph[:, sh:sh + Ho, sw:sw + Wo, :].astype(jnp.float32)
            acc = acc + tap * w[3 * dh + dw].reshape(1, 1, 1, C)
    y = acc * scale_ref[...].reshape(1, 1, 1, C) + shift_ref[...].reshape(1, 1, 1, C)
    o_ref[...] = jnp.clip(y, 0.0, 6.0).astype(o_ref.dtype)


def _dw_params():
    return pltpu.CompilerParams(dimension_semantics=("parallel",),
                                vmem_limit_bytes=_VMEM_LIMIT)


def dw3x3_s1(xpad, w9, scale, shift):
    B, Hp, Wp, C = xpad.shape
    Ho, Wo = Hp - 2, Wp - 2
    return pl.pallas_call(
        _dw3x3_s1_kernel,
        grid=(B,),
        in_specs=[
            pl.BlockSpec((1, Hp, Wp, C), lambda b: (b, 0, 0, 0)),
            pl.BlockSpec((9, C), lambda b: (0, 0)),
            pl.BlockSpec((1, C), lambda b: (0, 0)),
            pl.BlockSpec((1, C), lambda b: (0, 0)),
        ],
        out_specs=pl.BlockSpec((1, Ho, Wo, C), lambda b: (b, 0, 0, 0)),
        out_shape=jax.ShapeDtypeStruct((B, Ho, Wo, C), jnp.bfloat16),
        compiler_params=_dw_params(),
        cost_estimate=pl.CostEstimate(
            flops=18 * B * Ho * Wo * C, transcendentals=0,
            bytes_accessed=2 * B * (Hp * Wp + Ho * Wo) * C),
    )(xpad, w9, scale, shift)


def dw3x3_s2(p00, p01, p10, p11, w9, scale, shift):
    B, _, _, C = p00.shape
    Ho, Wo = p11.shape[1], p11.shape[2]

    def spec(p):
        _, h, w_, c = p.shape
        return pl.BlockSpec((1, h, w_, c), lambda b: (b, 0, 0, 0))

    return pl.pallas_call(
        _dw3x3_s2_kernel,
        grid=(B,),
        in_specs=[spec(p00), spec(p01), spec(p10), spec(p11),
                  pl.BlockSpec((9, C), lambda b: (0, 0)),
                  pl.BlockSpec((1, C), lambda b: (0, 0)),
                  pl.BlockSpec((1, C), lambda b: (0, 0))],
        out_specs=pl.BlockSpec((1, Ho, Wo, C), lambda b: (b, 0, 0, 0)),
        out_shape=jax.ShapeDtypeStruct((B, Ho, Wo, C), jnp.bfloat16),
        compiler_params=_dw_params(),
        cost_estimate=pl.CostEstimate(
            flops=18 * B * Ho * Wo * C, transcendentals=0,
            bytes_accessed=2 * B * (4 * (Ho + 1) * (Wo + 1) + Ho * Wo) * C),
    )(p00, p01, p10, p11, w9, scale, shift)


# ---------------------- jitted per-layer forward ops -----------------------

@functools.partial(jax.jit, static_argnames=("relu6", "out_dtype", "n_valid"))
def pw_conv_bn_act(x, w, scale, shift, res=None, *, relu6,
                   out_dtype=jnp.bfloat16, n_valid=None):
    B, H, W, C = x.shape
    res2d = None if res is None else res.reshape(B * H * W, res.shape[-1])
    y = matmul_bn_act(x.reshape(B * H * W, C), w, scale, shift, res2d,
                      relu6=relu6, out_dtype=out_dtype)
    if n_valid is not None and n_valid != y.shape[1]:
        y = y[:, :n_valid]                 # drop lane padding of head outputs
    return y.reshape(B, H, W, -1)


@functools.partial(jax.jit, static_argnames=("stride",))
def dw_conv_bn_relu6(x, w9, scale, shift, *, stride):
    xpad = jnp.pad(x.astype(jnp.bfloat16), ((0, 0), (1, 1), (1, 1), (0, 0)))
    B, Hp, Wp, C = xpad.shape
    H, W = Hp - 2, Wp - 2
    if stride == 1:
        return dw3x3_s1(xpad, w9, scale, shift)
    # stride-2: space-to-depth phase split in XLA glue; kernel computes the
    # strided output directly.
    Ho = (H - 1) // stride + 1
    Wo = (W - 1) // stride + 1
    p00 = xpad[:, 0::2, 0::2, :][:, :Ho + 1, :Wo + 1, :]
    p01 = xpad[:, 0::2, 1::2, :][:, :Ho + 1, :Wo, :]
    p10 = xpad[:, 1::2, 0::2, :][:, :Ho, :Wo + 1, :]
    p11 = xpad[:, 1::2, 1::2, :][:, :Ho, :Wo, :]
    return dw3x3_s2(p00, p01, p10, p11, w9, scale, shift)


@functools.partial(jax.jit, static_argnames=("stride",))
def conv3x3_bn_relu6(x, w, scale, shift, *, stride):
    # general 3x3 conv via strided im2col (glue) + fused matmul/BN/ReLU6 kernel
    xpad = jnp.pad(x.astype(jnp.bfloat16), ((0, 0), (1, 1), (1, 1), (0, 0)))
    B, Hp, Wp, C = xpad.shape
    H, W = Hp - 2, Wp - 2
    Ho = (H - 1) // stride + 1
    Wo = (W - 1) // stride + 1
    cols = jnp.concatenate(
        [xpad[:, dh:dh + stride * (Ho - 1) + 1:stride,
              dw:dw + stride * (Wo - 1) + 1:stride, :]
         for dh in range(3) for dw in range(3)], axis=-1)
    y = matmul_bn_act(cols.reshape(B * Ho * Wo, 9 * C), w, scale, shift,
                      relu6=True)
    return y.reshape(B, Ho, Wo, -1)


# --------------------------- layer application ----------------------------

def apply_pw(p, x, res=None):
    return pw_conv_bn_act(
        x, p["w"], p["scale"], p["shift"], res,
        relu6=p["relu6"],
        out_dtype=jnp.float32 if p.get("final", False) else jnp.bfloat16,
        n_valid=p.get("n_valid"))


def apply_dw(p, x):
    return dw_conv_bn_relu6(x, p["w"], p["scale"], p["shift"],
                            stride=p["stride"])


def apply_conv3(p, x):
    return conv3x3_bn_relu6(x, p["w"], p["scale"], p["shift"],
                            stride=p["stride"])


def apply_layer(layer, x):
    t = layer["type"]
    if t == "pw":
        return apply_pw(layer, x)
    if t == "dw":
        return apply_dw(layer, x)
    if t == "conv3":
        return apply_conv3(layer, x)
    if t == "invres":
        sub = layer["layers"]
        y = x
        for s in sub[:-1]:
            y = apply_layer(s, y)
        res = x if layer["residual"] else None
        return apply_pw(sub[-1], y, res=res)     # residual fused into projection
    raise ValueError(t)


def apply_head(h, x):
    return apply_pw(h["pw"], apply_dw(h["dw"], x))


# --------------------------- parameter building ---------------------------

class ParamGen:
    def __init__(self, seed=0):
        self.key = jax.random.PRNGKey(seed)

    def normal(self, shape, std):
        self.key, sub = jax.random.split(self.key)
        return std * jax.random.normal(sub, shape, jnp.float32)


def make_pw(gen, cin, cout, relu6):
    # 1x1 conv with BN folded to per-channel scale/shift (inference stats).
    return {"type": "pw", "relu6": relu6,
            "w": gen.normal((cin, cout), 1.0 / (cin ** 0.5)).astype(jnp.bfloat16),
            "scale": 1.0 + gen.normal((1, cout), 0.05),
            "shift": gen.normal((1, cout), 0.05)}


def make_head_pw(gen, cin, cout):
    # head 1x1 conv with bias; output channels zero-padded to a lane-dense 128.
    n_pad = _round_up(cout, 128)
    w = jnp.zeros((cin, n_pad), jnp.float32).at[:, :cout].set(
        gen.normal((cin, cout), 1.0 / (cin ** 0.5)))
    shift = jnp.zeros((1, n_pad), jnp.float32).at[:, :cout].set(
        gen.normal((1, cout), 0.05))
    return {"type": "pw", "relu6": False, "final": True, "n_valid": cout,
            "w": w.astype(jnp.bfloat16),
            "scale": jnp.ones((1, n_pad), jnp.float32),
            "shift": shift}


def make_dw(gen, c, stride):
    return {"type": "dw", "stride": stride,
            "w": gen.normal((9, c), 1.0 / 3.0),
            "scale": 1.0 + gen.normal((1, c), 0.05),
            "shift": gen.normal((1, c), 0.05)}


def make_conv3(gen, cin, cout, stride):
    return {"type": "conv3", "stride": stride,
            "w": gen.normal((9 * cin, cout), 1.0 / ((9 * cin) ** 0.5)).astype(jnp.bfloat16),
            "scale": 1.0 + gen.normal((1, cout), 0.05),
            "shift": gen.normal((1, cout), 0.05)}


def make_inverted_residual(gen, inp, oup, stride, expand):
    hidden = int(round(inp * expand))
    layers = []
    if expand != 1:
        layers.append(make_pw(gen, inp, hidden, relu6=True))
    layers.append(make_dw(gen, hidden, stride))
    layers.append(make_pw(gen, hidden, oup, relu6=False))  # linear bottleneck
    return {"type": "invres", "layers": layers,
            "residual": stride == 1 and inp == oup}


def _make_divisible(v, divisor=8, min_value=None):
    if min_value is None:
        min_value = divisor
    new_v = max(min_value, int(v + divisor / 2) // divisor * divisor)
    if new_v < 0.9 * v:
        new_v += divisor
    return new_v


def build_ssdlite_mobilenet_v2(num_class, width_ratio=1.0, seed=0):
    gen = ParamGen(seed)

    # ---- MobileNetV2.features (torchvision config) ----
    cfg = [[1, 16, 1, 1], [6, 24, 2, 2], [6, 32, 3, 2], [6, 64, 4, 2],
           [6, 96, 3, 1], [6, 160, 3, 2], [6, 320, 1, 1]]
    in_ch = _make_divisible(32 * width_ratio, 8)
    last_ch = _make_divisible(1280 * max(1.0, width_ratio), 8)
    features = [make_conv3(gen, 3, in_ch, stride=2)]
    for t, c, n, s in cfg:
        out_ch = _make_divisible(c * width_ratio, 8)
        for i in range(n):
            features.append(make_inverted_residual(gen, in_ch, out_ch,
                                                   s if i == 0 else 1, t))
            in_ch = out_ch
    features.append(make_pw(gen, in_ch, last_ch, relu6=True))

    # source channels: expansion output of features[14] and the final 1280 map
    src_ch = [features[14]["layers"][0]["w"].shape[1], last_ch]

    # ---- ssd_body (SSDLite extra feature layers) ----
    # TODO(synk): ssd_body()/multibox() sources were not provided; a standard
    # SSDLite extras / separable-conv-head configuration (6 anchors) is assumed.
    extras_cfg = [(last_ch, 256, 512), (512, 128, 256), (256, 128, 256), (256, 64, 128)]
    ssdlite = []
    for cin, mid, cout in extras_cfg:
        ssdlite.append({"type": "invres", "residual": False, "layers": [
            make_pw(gen, cin, mid, relu6=True),
            make_dw(gen, mid, stride=2),
            make_pw(gen, mid, cout, relu6=True)]})
        src_ch.append(cout)

    # ---- multibox heads: dw 3x3 + BN + ReLU6 followed by 1x1 conv (bias) ----
    anchors = [6] * 6
    loc_layers, conf_layers = [], []
    for a, c in zip(anchors, src_ch):
        loc_layers.append({"dw": make_dw(gen, c, 1),
                           "pw": make_head_pw(gen, c, a * 4)})
        conf_layers.append({"dw": make_dw(gen, c, 1),
                            "pw": make_head_pw(gen, c, a * num_class)})

    return {"features": features, "ssdlite": ssdlite,
            "loc": loc_layers, "conf": conf_layers, "num_classes": num_class}


# ------------------------------- forward ----------------------------------

def ssdlite_mobilenet_v2_forward(params, x_nchw, is_train=True):
    x = jnp.transpose(x_nchw, (0, 2, 3, 1)).astype(jnp.bfloat16)  # NCHW -> NHWC
    feats = params["features"]
    source = []

    for layer in feats[0:14]:
        x = apply_layer(layer, x)
    blk = feats[14]
    sub = blk["layers"]                 # == getattr(features[14], 'conv')
    x_in = x
    x = apply_layer(sub[0], x)
    source.append(x)
    for layer in sub[1:-1]:
        x = apply_layer(layer, x)
    x = apply_pw(sub[-1], x, res=(x_in if blk["residual"] else None))
    for layer in feats[15:]:
        x = apply_layer(layer, x)
    source.append(x)
    for layer in params["ssdlite"]:
        x = apply_layer(layer, x)
        source.append(x)

    B = x.shape[0]
    locs, confs = [], []
    for s, l, c in zip(source, params["loc"], params["conf"]):
        # NHWC flatten == permute(0,2,3,1).contiguous().view(B, -1)
        locs.append(apply_head(l, s).reshape(B, -1))
        confs.append(apply_head(c, s).reshape(B, -1))
    loc = jnp.concatenate(locs, axis=1).astype(jnp.float32)
    conf = jnp.concatenate(confs, axis=1).astype(jnp.float32)
    nc = params["num_classes"]
    if is_train:
        return loc.reshape(B, -1, 4), conf.reshape(B, -1, nc)
    sig = jax.nn.sigmoid(conf.reshape(-1, nc))
    return loc, jnp.max(sig, axis=1), jnp.argmax(sig, axis=1)


# --------------------------------- main ------------------------------------

if __name__ == "__main__":
    num_class = 4
    params = build_ssdlite_mobilenet_v2(num_class, width_ratio=0.25, seed=0)

    x = jax.random.normal(jax.random.PRNGKey(0), (2, 3, 64, 64), jnp.float32)
    loc, conf = ssdlite_mobilenet_v2_forward(params, x, is_train=True)
    jax.block_until_ready((loc, conf))

    assert loc.ndim == 3 and loc.shape[0] == 2 and loc.shape[2] == 4, loc.shape
    assert conf.ndim == 3 and conf.shape[0] == 2 and conf.shape[2] == num_class, conf.shape
    assert loc.shape[1] == conf.shape[1]
    assert bool(jnp.isfinite(loc).all()) and bool(jnp.isfinite(conf).all())
    print("KERNEL_OK")
</pallas_src>

<mosaic_0001>
module attributes {stable_mosaic.version = 11 : i64} {
  func.func @_matmul_bn_act_kernel(%arg0: i32, %arg1: memref<512x27xbf16, #tpu.memory_space<vmem>>, %arg2: memref<27x8xbf16, #tpu.memory_space<vmem>>, %arg3: memref<1x8xf32, #tpu.memory_space<vmem>>, %arg4: memref<1x8xf32, #tpu.memory_space<vmem>>, %arg5: memref<512x8xbf16, #tpu.memory_space<vmem>>) attributes {dimension_semantics = [#tpu.dimension_semantics<parallel>], iteration_bounds = array<i64: 4>, scalar_prefetch = 0 : i64, scratch_operands = 0 : i64, tpu.core_type = #tpu.core_type<tc>, window_params = [{transform_indices = @transform_0, window_bounds = array<i64: 512, 27>}, {pipeline_mode = #tpu.pipeline_mode<synchronous>, transform_indices = @transform_1, window_bounds = array<i64: 27, 8>}, {pipeline_mode = #tpu.pipeline_mode<synchronous>, transform_indices = @transform_2, window_bounds = array<i64: 1, 8>}, {pipeline_mode = #tpu.pipeline_mode<synchronous>, transform_indices = @transform_3, window_bounds = array<i64: 1, 8>}, {transform_indices = @transform_4, window_bounds = array<i64: 512, 8>}]} {
    %c0 = arith.constant 0 : index
    %c0_0 = arith.constant 0 : index
    %0 = vector.load %arg1[%c0, %c0_0] : memref<512x27xbf16, #tpu.memory_space<vmem>>, vector<512x27xbf16>
    %c0_1 = arith.constant 0 : index
    %c0_2 = arith.constant 0 : index
    %1 = vector.load %arg2[%c0_1, %c0_2] : memref<27x8xbf16, #tpu.memory_space<vmem>>, vector<27x8xbf16>
    %cst = arith.constant dense<0.000000e+00> : vector<512x8xf32>
    %2 = tpu.matmul %0, %1, %cst {dimension_numbers = #tpu.dot_dimension_numbers<[1], [0], [0], [1], [0, 0, 1, 1], [], []>} : vector<512x27xbf16>, vector<27x8xbf16>, vector<512x8xf32> -> vector<512x8xf32>
    %c0_3 = arith.constant 0 : index
    %c0_4 = arith.constant 0 : index
    %3 = vector.load %arg3[%c0_3, %c0_4] : memref<1x8xf32, #tpu.memory_space<vmem>>, vector<1x8xf32>
    %4 = vector.broadcast %3 : vector<1x8xf32> to vector<512x8xf32>
    %5 = arith.mulf %2, %4 : vector<512x8xf32>
    %c0_5 = arith.constant 0 : index
    %c0_6 = arith.constant 0 : index
    %6 = vector.load %arg4[%c0_5, %c0_6] : memref<1x8xf32, #tpu.memory_space<vmem>>, vector<1x8xf32>
    %7 = vector.broadcast %6 : vector<1x8xf32> to vector<512x8xf32>
    %8 = arith.addf %5, %7 : vector<512x8xf32>
    %cst_7 = arith.constant 0.000000e+00 : f32
    %cst_8 = arith.constant 6.000000e+00 : f32
    %9 = vector.broadcast %cst_7 : f32 to vector<512x8xf32>
    %10 = arith.maximumf %9, %8 : vector<512x8xf32>
    %11 = vector.broadcast %cst_8 : f32 to vector<512x8xf32>
    %12 = arith.minimumf %11, %10 : vector<512x8xf32>
    %13 = arith.truncf %12 : vector<512x8xf32> to vector<512x8xbf16>
    %c0_9 = arith.constant 0 : index
    %c0_10 = arith.constant 0 : index
    %14 = vector.load %arg5[%c0_9, %c0_10] : memref<512x8xbf16, #tpu.memory_space<vmem>>, vector<512x8xbf16>
    tpu.vector_store %arg5[%c0_9, %c0_10], %13 {strides = array<i32>} : memref<512x8xbf16, #tpu.memory_space<vmem>>, vector<512x8xbf16>,
    return
  }
  func.func @transform_0(%arg0: i32) -> (i32, i32) {
    %c0_i32 = arith.constant 0 : i32
    %c0_i32_0 = arith.constant 0 : i32
    return %arg0, %c0_i32 : i32, i32
  }
  func.func @transform_1(%arg0: i32) -> (i32, i32) {
    %c0_i32 = arith.constant 0 : i32
    %c0_i32_0 = arith.constant 0 : i32
    %c0_i32_1 = arith.constant 0 : i32
    return %c0_i32, %c0_i32_0 : i32, i32
  }
  func.func @transform_2(%arg0: i32) -> (i32, i32) {
    %c0_i32 = arith.constant 0 : i32
    %c0_i32_0 = arith.constant 0 : i32
    %c0_i32_1 = arith.constant 0 : i32
    return %c0_i32, %c0_i32_0 : i32, i32
  }
  func.func @transform_3(%arg0: i32) -> (i32, i32) {
    %c0_i32 = arith.constant 0 : i32
    %c0_i32_0 = arith.constant 0 : i32
    %c0_i32_1 = arith.constant 0 : i32
    return %c0_i32, %c0_i32_0 : i32, i32
  }
  func.func @transform_4(%arg0: i32) -> (i32, i32) {
    %c0_i32 = arith.constant 0 : i32
    %c0_i32_0 = arith.constant 0 : i32
    return %arg0, %c0_i32 : i32, i32
  }
}

</mosaic_0001>

<llo_original>
// kernel: conv3x3_bn_relu6.1
$region0: #{conv3x3_bn_relu6.1}
  #allocation0 [shape = 'u32[]', space=smem, size = 0x4, offset = 0x4, fixed_abs, tag = 'smem constant byte address 0x4 - core index']
  #allocation1 [shape = 'u32[144,128]{1,0:T(1,128)}', space=vmem, size = 0x12000, scoped, tag = 'internal scratch']
  %s0 = inlined_call_operand.vmem [shape: bf16[2048,27], index: 0, kind: input, shape index: {}]
  %s1 = inlined_call_operand.vmem [shape: bf16[27,8], index: 1, kind: input, shape index: {}]
  %s2 = inlined_call_operand.vmem [shape: f32[1,8], index: 2, kind: input, shape index: {}]
  %s3 = inlined_call_operand.vmem [shape: f32[1,8], index: 3, kind: input, shape index: {}]
  %s4 = inlined_call_operand.vmem [shape: bf16[2048,8], index: 4, kind: output, shape index: {}]
  %s5 = sld [smem:[#allocation0]]
  $region49: #{conv3x3_bn_relu6.1} parent=0
    _
  %s7 = ssub.s32 1, %s5
  %s8 = scalar_select 0, %s7, %s5
  loop: start=0, step=1, limit=6
  $region2: #{conv3x3_bn_relu6.1} parent=0 // loop_pre_header
    _
  $region3: #{conv3x3_bn_relu6.1} parent=0 // loop_header
    %s10 = sphi 0, %s14
    %p11 = scmp.ge.s32.totalorder %s10, 6
    %s20 = sphi 0, %s22
    %s23 = sphi 0, %s20
    %s24 = sphi 0, %s23
    %s40 = sphi 0, %s24
    %s44 = sphi 0, %s44
    %s46 = sphi 0, %s44
    %s47 = sphi 0, %s46
    %s61 = sphi 0, %s47
    %s65 = sphi 0, %s65
    %s67 = sphi 0, %s65
    %s68 = sphi 0, %s67
    %s82 = sphi 0, %s68
    %s86 = sphi 0, %s86
    %s88 = sphi 0, %s86
    %s89 = sphi 0, %s88
    %s103 = sphi 0, %s89
    %s109 = sphi 0, %s111
    %s112 = sphi 0, %s109
    %s113 = sphi 0, %s112
    %s129 = sphi 0, %s113
  $region4: #{conv3x3_bn_relu6.1} parent=0 // loop_header_branch
    %13 = sbr.rel (%p11) target = $region8
  $region5: #{conv3x3_bn_relu6.1} parent=0 // loop_body
    %s15 = ssub.s32 %s10, 1
    %s16 = ssub.s32 %s10, 2
    %s17 = sadd.s32 %s10, 1
    %s18 = ssub.s32 %s10, %s17
    %p19 = scmp.eq.s32.totalorder %s18, 0
    %s21 = sadd.s32 %s20, 1
    %s22 = scalar_select %p19, %s20, %s21
    %p25 = pneg %p19
    %p26 = scmp.eq.s32.totalorder %s10, 3
    %p27 = por %p25, %p26
    %p28 = scmp.ne.s32.totalorder %s20, %s23
    %p29 = scmp.eq.s32.totalorder %s10, 0
    %p30 = por %p28, %p29
    %p31 = scmp.ne.s32.totalorder %s20, %s23
    %p32 = scmp.eq.s32.totalorder %s15, 3
    %p33 = por %p31, %p32
    %p34 = scmp.ne.s32.totalorder %s23, %s24
    %p35 = scmp.eq.s32.totalorder %s15, 0
    %p36 = por %p34, %p35
    %p37 = scmp.ne.s32.totalorder %s23, %s24
    %p38 = scmp.eq.s32.totalorder %s16, 3
    %p39 = por %p37, %p38
    %p41 = scmp.ne.s32.totalorder %s24, %s40
    %p42 = scmp.eq.s32.totalorder %s16, 0
    %p43 = por %p41, %p42
    %s45 = sadd.s32 %s44, 1
    %p48 = scmp.eq.s32.totalorder %s10, 3
    %p49 = scmp.ne.s32.totalorder %s44, %s46
    %p50 = scmp.eq.s32.totalorder %s10, 0
    %p51 = por %p49, %p50
    %p52 = scmp.ne.s32.totalorder %s44, %s46
    %p53 = scmp.eq.s32.totalorder %s15, 3
    %p54 = por %p52, %p53
    %p55 = scmp.ne.s32.totalorder %s46, %s47
    %p56 = scmp.eq.s32.totalorder %s15, 0
    %p57 = por %p55, %p56
    %p58 = scmp.ne.s32.totalorder %s46, %s47
    %p59 = scmp.eq.s32.totalorder %s16, 3
    %p60 = por %p58, %p59
    %p62 = scmp.ne.s32.totalorder %s47, %s61
    %p63 = scmp.eq.s32.totalorder %s16, 0
    %p64 = por %p62, %p63
    %s66 = sadd.s32 %s65, 1
    %p69 = scmp.eq.s32.totalorder %s10, 3
    %p70 = scmp.ne.s32.totalorder %s65, %s67
    %p71 = scmp.eq.s32.totalorder %s10, 0
    %p72 = por %p70, %p71
    %p73 = scmp.ne.s32.totalorder %s65, %s67
    %p74 = scmp.eq.s32.totalorder %s15, 3
    %p75 = por %p73, %p74
    %p76 = scmp.ne.s32.totalorder %s67, %s68
    %p77 = scmp.eq.s32.totalorder %s15, 0
    %p78 = por %p76, %p77
    %p79 = scmp.ne.s32.totalorder %s67, %s68
    %p80 = scmp.eq.s32.totalorder %s16, 3
    %p81 = por %p79, %p80
    %p83 = scmp.ne.s32.totalorder %s68, %s82
    %p84 = scmp.eq.s32.totalorder %s16, 0
    %p85 = por %p83, %p84
    %s87 = sadd.s32 %s86, 1
    %p90 = scmp.eq.s32.totalorder %s10, 3
    %p91 = scmp.ne.s32.totalorder %s86, %s88
    %p92 = scmp.eq.s32.totalorder %s10, 0
    %p93 = por %p91, %p92
    %p94 = scmp.ne.s32.totalorder %s86, %s88
    %p95 = scmp.eq.s32.totalorder %s15, 3
    %p96 = por %p94, %p95
    %p97 = scmp.ne.s32.totalorder %s88, %s89
    %p98 = scmp.eq.s32.totalorder %s15, 0
    %p99 = por %p97, %p98
    %p100 = scmp.ne.s32.totalorder %s88, %s89
    %p101 = scmp.eq.s32.totalorder %s16, 3
    %p102 = por %p100, %p101
    %p104 = scmp.ne.s32.totalorder %s89, %s103
    %p105 = scmp.eq.s32.totalorder %s16, 0
    %p106 = por %p104, %p105
    %s107 = ssub.s32 %s10, %s17
    %p108 = scmp.eq.s32.totalorder %s107, 0
    %s110 = sadd.s32 %s109, 1
    %s111 = scalar_select %p108, %s109, %s110
    %p114 = pneg %p108
    %p115 = scmp.eq.s32.totalorder %s10, 3
    %p116 = por %p114, %p115
    %p117 = scmp.ne.s32.totalorder %s109, %s112
    %p118 = scmp.eq.s32.totalorder %s10, 0
    %p119 = por %p117, %p118
    %p120 = scmp.ne.s32.totalorder %s109, %s112
    %p121 = scmp.eq.s32.totalorder %s15, 3
    %p122 = por %p120, %p121
    %p123 = scmp.ne.s32.totalorder %s112, %s113
    %p124 = scmp.eq.s32.totalorder %s15, 0
    %p125 = por %p123, %p124
    %p126 = scmp.ne.s32.totalorder %s112, %s113
    %p127 = scmp.eq.s32.totalorder %s16, 3
    %p128 = por %p126, %p127
    %p130 = scmp.ne.s32.totalorder %s113, %s129
    %p131 = scmp.eq.s32.totalorder %s16, 0
    %p132 = por %p130, %p131
    %p133 = scmp.le.s32.totalorder 1, %s10
    %p134 = scmp.lt.s32.totalorder %s10, 5
    %p135 = pnand %p133, %p134
    %p136 = pneg %p135
    // Predicated region
    $region9: #{conv3x3_bn_relu6.1} parent=5 // pred_check
      _
    $region10: #{conv3x3_bn_relu6.1} parent=5 // pred_check_branch
      %138 = sbr.rel (%p135) target = $region12
    $region11: #{conv3x3_bn_relu6.1} parent=5 // pred_region
      %s139 = ssub.s32 %s10, 1
      // Predicated region
      $region13: #{conv3x3_bn_relu6.1} parent=11 // pred_check
        %p140 = pneg %p57
      $region14: #{conv3x3_bn_relu6.1} parent=11 // pred_check_branch
        %142 = sbr.rel (%p140) target = $region16
      $region15: #{conv3x3_bn_relu6.1} parent=11 // pred_region
        _
      $region16: #{conv3x3_bn_relu6.1} parent=11 // pred_fallthru
        _
      // Predicated region
      $region17: #{conv3x3_bn_relu6.1} parent=11 // pred_check
        %p143 = pneg %p78
      $region18: #{conv3x3_bn_relu6.1} parent=11 // pred_check_branch
        %145 = sbr.rel (%p143) target = $region20
      $region19: #{conv3x3_bn_relu6.1} parent=11 // pred_region
        _
      $region20: #{conv3x3_bn_relu6.1} parent=11 // pred_fallthru
        _
      // Predicated region
      $region21: #{conv3x3_bn_relu6.1} parent=11 // pred_check
        %p146 = pneg %p99
      $region22: #{conv3x3_bn_relu6.1} parent=11 // pred_check_branch
        %148 = sbr.rel (%p146) target = $region24
      $region23: #{conv3x3_bn_relu6.1} parent=11 // pred_region
        _
      $region24: #{conv3x3_bn_relu6.1} parent=11 // pred_fallthru
        _
    $region12: #{conv3x3_bn_relu6.1} parent=5 // pred_fallthru
      _
    %p149 = scmp.lt.s32.totalorder %s10, 4
    // Predicated region
    $region25: #{conv3x3_bn_relu6.1} parent=5 // pred_check
      %p150 = pneg %p149
    $region26: #{conv3x3_bn_relu6.1} parent=5 // pred_check_branch
      %152 = sbr.rel (%p150) target = $region28
    $region27: #{conv3x3_bn_relu6.1} parent=5 // pred_region
      // Predicated region
      $region29: #{conv3x3_bn_relu6.1} parent=27 // pred_check
        %p153 = pneg %p30
      $region30: #{conv3x3_bn_relu6.1} parent=27 // pred_check_branch
        %155 = sbr.rel (%p153) target = $region32
      $region31: #{conv3x3_bn_relu6.1} parent=27 // pred_region
        %s156 = smul.u32 64, %s10
        %p157 = scmp.lt.s32.totalorder %s156, 255
        %s158 = scalar_select %p157, %s156, 255
        %s159 = smul.addr %s158, 4
        %s160 = scalar_lea.vmem %s0, %s159
        %s161 = smul.u32 64, %s10
      $region32: #{conv3x3_bn_relu6.1} parent=27 // pred_fallthru
        _
    $region28: #{conv3x3_bn_relu6.1} parent=5 // pred_fallthru
      _
    %p162 = scmp.le.s32.totalorder 1, %s10
    %p163 = scmp.lt.s32.totalorder %s10, 5
    %p164 = pnand %p162, %p163
    %p165 = pneg %p164
    // Predicated region
    $region33: #{conv3x3_bn_relu6.1} parent=5 // pred_check
      _
    $region34: #{conv3x3_bn_relu6.1} parent=5 // pred_check_branch
      %167 = sbr.rel (%p164) target = $region36
    $region35: #{conv3x3_bn_relu6.1} parent=5 // pred_region
      %s168 = ssub.s32 %s10, 1
      %s169 = smul.u32 64, %s15
      %p170 = scmp.lt.s32.totalorder %s169, 255
      %s171 = scalar_select %p170, %s169, 255
      %s172 = smul.addr %s171, 4
      %s173 = scalar_lea.vmem %s0, %s172
      %p174 = pneg %p36
      %p175 = pneg %p33
      %p176 = pneg %p57
      %p177 = pneg %p54
      %p178 = pneg %p78
      %p179 = pneg %p75
      %p180 = pneg %p99
      %p181 = pneg %p96
      %p182 = pneg %p125
      %p183 = pneg %p122
      %s184 = smul.u32 64, %s15
      %p185 = scmp.lt.s32.totalorder %s184, 255
      %s186 = scalar_select %p185, %s184, 255
      %s187 = smul.addr %s186, 4
      %s188 = scalar_lea.vmem %s4, %s187
      %s189 = smul.u32 64, %s15
      %p190 = scmp.lt.s32.totalorder %s189, 255
      %s191 = scalar_select %p190, %s189, 255
      %s192 = smul.addr %s191, 4
      %s193 = scalar_lea.vmem %s0, %s192
      %s194 = smul.u32 64, %s15
      %s195 = smul.u32 64, %s15
      %p196 = scmp.lt.s32.totalorder %s195, 255
      %s197 = scalar_select %p196, %s195, 255
      %s198 = smul.addr %s197, 4
      %s199 = scalar_lea.vmem %s4, %s198
      %s200 = smul.u32 64, %s15
      %v202 = vld [vmem:[%s193] sm:$0xf]
      %v203 = vld [vmem:[%s193 + $0x4] sm:$0xf]
      %v204 = vld [vmem:[%s193 + $0x8] sm:$0xf]
      %v205 = vld [vmem:[%s193 + $0xc] sm:$0xf]
      %v206 = vld [vmem:[%s193 + $0x10] sm:$0xf]
      %v207 = vld [vmem:[%s193 + $0x14] sm:$0xf]
      %v208 = vld [vmem:[%s193 + $0x18] sm:$0xf]
      %v209 = vld [vmem:[%s193 + $0x1c] sm:$0xf]
      %v210 = vld [vmem:[%s193 + $0x20] sm:$0xf]
      %v211 = vld [vmem:[%s193 + $0x24] sm:$0xf]
      %v212 = vld [vmem:[%s193 + $0x28] sm:$0xf]
      %v213 = vld [vmem:[%s193 + $0x2c] sm:$0xf]
      %v214 = vld [vmem:[%s193 + $0x30] sm:$0xf]
      %v215 = vld [vmem:[%s193 + $0x34] sm:$0xf]
      %v216 = vld [vmem:[%s193 + $0x38] sm:$0xf]
      %v217 = vld [vmem:[%s193 + $0x3c] sm:$0xf]
      %v218 = vld [vmem:[%s193 + $0x40] sm:$0xf]
      %v219 = vld [vmem:[%s193 + $0x44] sm:$0xf]
      %v220 = vld [vmem:[%s193 + $0x48] sm:$0xf]
      %v221 = vld [vmem:[%s193 + $0x4c] sm:$0xf]
      %v222 = vld [vmem:[%s193 + $0x50] sm:$0xf]
      %v223 = vld [vmem:[%s193 + $0x54] sm:$0xf]
      %v224 = vld [vmem:[%s193 + $0x58] sm:$0xf]
      %v225 = vld [vmem:[%s193 + $0x5c] sm:$0xf]
      %v226 = vld [vmem:[%s193 + $0x60] sm:$0xf]
      %v227 = vld [vmem:[%s193 + $0x64] sm:$0xf]
      %v228 = vld [vmem:[%s193 + $0x68] sm:$0xf]
      %v229 = vld [vmem:[%s193 + $0x6c] sm:$0xf]
      %v230 = vld [vmem:[%s193 + $0x70] sm:$0xf]
      %v231 = vld [vmem:[%s193 + $0x74] sm:$0xf]
      %v232 = vld [vmem:[%s193 + $0x78] sm:$0xf]
      %v233 = vld [vmem:[%s193 + $0x7c] sm:$0xf]
      %v234 = vld [vmem:[%s193 + $0x80] sm:$0xf]
      %v235 = vld [vmem:[%s193 + $0x84] sm:$0xf]
      %v236 = vld [vmem:[%s193 + $0x88] sm:$0xf]
      %v237 = vld [vmem:[%s193 + $0x8c] sm:$0xf]
      %v238 = vld [vmem:[%s193 + $0x90] sm:$0xf]
      %v239 = vld [vmem:[%s193 + $0x94] sm:$0xf]
      %v240 = vld [vmem:[%s193 + $0x98] sm:$0xf]
      %v241 = vld [vmem:[%s193 + $0x9c] sm:$0xf]
      %v242 = vld [vmem:[%s193 + $0xa0] sm:$0xf]
      %v243 = vld [vmem:[%s193 + $0xa4] sm:$0xf]
      %v244 = vld [vmem:[%s193 + $0xa8] sm:$0xf]
      %v245 = vld [vmem:[%s193 + $0xac] sm:$0xf]
      %v246 = vld [vmem:[%s193 + $0xb0] sm:$0xf]
      %v247 = vld [vmem:[%s193 + $0xb4] sm:$0xf]
      %v248 = vld [vmem:[%s193 + $0xb8] sm:$0xf]
      %v249 = vld [vmem:[%s193 + $0xbc] sm:$0xf]
      %v250 = vld [vmem:[%s193 + $0xc0] sm:$0xf]
      %v251 = vld [vmem:[%s193 + $0xc4] sm:$0xf]
      %v252 = vld [vmem:[%s193 + $0xc8] sm:$0xf]
      %v253 = vld [vmem:[%s193 + $0xcc] sm:$0xf]
      %v254 = vld [vmem:[%s193 + $0xd0] sm:$0xf]
      %v255 = vld [vmem:[%s193 + $0xd4] sm:$0xf]
      %v256 = vld [vmem:[%s193 + $0xd8] sm:$0xf]
      %v257 = vld [vmem:[%s193 + $0xdc] sm:$0xf]
      %v258 = vld [vmem:[%s193 + $0xe0] sm:$0xf]
      %v259 = vld [vmem:[%s193 + $0xe4] sm:$0xf]
      %v260 = vld [vmem:[%s193 + $0xe8] sm:$0xf]
      %v261 = vld [vmem:[%s193 + $0xec] sm:$0xf]
      %v262 = vld [vmem:[%s193 + $0xf0] sm:$0xf]
      %v263 = vld [vmem:[%s193 + $0xf4] sm:$0xf]
      %v264 = vld [vmem:[%s193 + $0xf8] sm:$0xf]
      %v265 = vld [vmem:[%s193 + $0xfc] sm:$0xf]
      %v266 = vld [vmem:[%s1] sm:$0xf]
      %v267 = vld [vmem:[%s1 + $0x4] sm:$0xf]
      %v268 = vld [vmem:[%s1 + $0x8] sm:$0xf]
      %v269 = vld [vmem:[%s1 + $0xc] sm:$0x3]
      %v334 = vunpack.c.l.b16 %v202
      %v335 = vunpack.c.l.b16 %v203
      %v336 = vunpack.c.l.b16 %v204
      %v337 = vunpack.c.l.b16 %v205
      %v338 = vunpack.c.l.b16 %v206
      %v339 = vunpack.c.l.b16 %v207
      %v340 = vunpack.c.l.b16 %v208
      %v341 = vunpack.c.l.b16 %v209
      %v342 = vunpack.c.l.b16 %v210
      %v343 = vunpack.c.l.b16 %v211
      %v344 = vunpack.c.l.b16 %v212
      %v345 = vunpack.c.l.b16 %v213
      %v346 = vunpack.c.l.b16 %v214
      %v347 = vunpack.c.l.b16 %v215
      %v348 = vunpack.c.l.b16 %v216
      %v349 = vunpack.c.l.b16 %v217
      %v350 = vunpack.c.l.b16 %v218
      %v351 = vunpack.c.l.b16 %v219
      %v352 = vunpack.c.l.b16 %v220
      %v353 = vunpack.c.l.b16 %v221
      %v354 = vunpack.c.l.b16 %v222
      %v355 = vunpack.c.l.b16 %v223
      %v356 = vunpack.c.l.b16 %v224
      %v357 = vunpack.c.l.b16 %v225
      %v358 = vunpack.c.l.b16 %v226
      %v359 = vunpack.c.l.b16 %v227
      %v360 = vunpack.c.l.b16 %v228
      %v361 = vunpack.c.l.b16 %v229
      %v362 = vunpack.c.l.b16 %v230
      %v363 = vunpack.c.l.b16 %v231
      %v364 = vunpack.c.l.b16 %v232
      %v365 = vunpack.c.l.b16 %v233
      %v366 = vunpack.c.l.b16 %v234
      %v367 = vunpack.c.l.b16 %v235
      %v368 = vunpack.c.l.b16 %v236
      %v369 = vunpack.c.l.b16 %v237
      %v370 = vunpack.c.l.b16 %v238
      %v371 = vunpack.c.l.b16 %v239
      %v372 = vunpack.c.l.b16 %v240
      %v373 = vunpack.c.l.b16 %v241
      %v374 = vunpack.c.l.b16 %v242
      %v375 = vunpack.c.l.b16 %v243
      %v376 = vunpack.c.l.b16 %v244
      %v377 = vunpack.c.l.b16 %v245
      %v378 = vunpack.c.l.b16 %v246
      %v379 = vunpack.c.l.b16 %v247
      %v380 = vunpack.c.l.b16 %v248
      %v381 = vunpack.c.l.b16 %v249
      %v382 = vunpack.c.l.b16 %v250
      %v383 = vunpack.c.l.b16 %v251
      %v384 = vunpack.c.l.b16 %v252
      %v385 = vunpack.c.l.b16 %v253
      %v386 = vunpack.c.l.b16 %v254
      %v387 = vunpack.c.l.b16 %v255
      %v388 = vunpack.c.l.b16 %v256
      %v389 = vunpack.c.l.b16 %v257
      %v390 = vunpack.c.l.b16 %v258
      %v391 = vunpack.c.l.b16 %v259
      %v392 = vunpack.c.l.b16 %v260
      %v393 = vunpack.c.l.b16 %v261
      %v394 = vunpack.c.l.b16 %v262
      %v395 = vunpack.c.l.b16 %v263
      %v396 = vunpack.c.l.b16 %v264
      %v397 = vunpack.c.l.b16 %v265
      %v398 = vpack.c.b16 %v335, %v334
      %v399 = vpack.c.b16 %v337, %v336
      %v400 = vpack.c.b16 %v339, %v338
      %v401 = vpack.c.b16 %v341, %v340
      %v402 = vpack.c.b16 %v343, %v342
      %v403 = vpack.c.b16 %v345, %v344
      %v404 = vpack.c.b16 %v347, %v346
      %v405 = vpack.c.b16 %v349, %v348
      %v406 = vpack.c.b16 %v351, %v350
      %v407 = vpack.c.b16 %v353, %v352
      %v408 = vpack.c.b16 %v355, %v354
      %v409 = vpack.c.b16 %v357, %v356
      %v410 = vpack.c.b16 %v359, %v358
      %v411 = vpack.c.b16 %v361, %v360
      %v412 = vpack.c.b16 %v363, %v362
      %v413 = vpack.c.b16 %v365, %v364
      %v414 = vpack.c.b16 %v367, %v366
      %v415 = vpack.c.b16 %v369, %v368
      %v416 = vpack.c.b16 %v371, %v370
      %v417 = vpack.c.b16 %v373, %v372
      %v418 = vpack.c.b16 %v375, %v374
      %v419 = vpack.c.b16 %v377, %v376
      %v420 = vpack.c.b16 %v379, %v378
      %v421 = vpack.c.b16 %v381, %v380
      %v422 = vpack.c.b16 %v383, %v382
      %v423 = vpack.c.b16 %v385, %v384
      %v424 = vpack.c.b16 %v387, %v386
      %v425 = vpack.c.b16 %v389, %v388
      %v426 = vpack.c.b16 %v391, %v390
      %v427 = vpack.c.b16 %v393, %v392
      %v428 = vpack.c.b16 %v395, %v394
      %v429 = vpack.c.b16 %v397, %v396
      %v434 = vunpack.c.l.b16 %v266
      %v435 = vunpack.c.l.b16 %v267
      %v436 = vunpack.c.l.b16 %v268
      %v437 = vunpack.c.l.b16 %v269
      %v438 = vpack.c.b16 %v435, %v434
      %v439 = vpack.c.b16 %v437, %v436
      %vm441 = vcmask 220160
      %v443 = vsel %vm441, %v398, 0
      %v446 = vsel %vm441, %v399, 0
      %v449 = vsel %vm441, %v400, 0
      %v452 = vsel %vm441, %v401, 0
      %v455 = vsel %vm441, %v402, 0
      %v458 = vsel %vm441, %v403, 0
      %v461 = vsel %vm441, %v404, 0
      %v464 = vsel %vm441, %v405, 0
      %v467 = vsel %vm441, %v406, 0
      %v470 = vsel %vm441, %v407, 0
      %v473 = vsel %vm441, %v408, 0
      %v476 = vsel %vm441, %v409, 0
      %v479 = vsel %vm441, %v410, 0
      %v482 = vsel %vm441, %v411, 0
      %v485 = vsel %vm441, %v412, 0
      %v488 = vsel %vm441, %v413, 0
      %v491 = vsel %vm441, %v414, 0
      %v494 = vsel %vm441, %v415, 0
      %v497 = vsel %vm441, %v416, 0
      %v500 = vsel %vm441, %v417, 0
      %v503 = vsel %vm441, %v418, 0
      %v506 = vsel %vm441, %v419, 0
      %v509 = vsel %vm441, %v420, 0
      %v512 = vsel %vm441, %v421, 0
      %v515 = vsel %vm441, %v422, 0
      %v518 = vsel %vm441, %v423, 0
      %v521 = vsel %vm441, %v424, 0
      %v524 = vsel %vm441, %v425, 0
      %v527 = vsel %vm441, %v426, 0
      %v530 = vsel %vm441, %v427, 0
      %v533 = vsel %vm441, %v428, 0
      %v536 = vsel %vm441, %v429, 0
      %vm538 = vcmask 1044480
      %vm539 = vcmask 1045504
      %v540 = vsel %vm538, 4294967295, 65535
      %v541 = vsel %vm539, %v540, 0
      %v543 = vand.u32 %v439, %v541
      %545 = vmatprep.subr.bf16.mxu0 0
      %546 = vmatpush1.bf16.msra.mxu0 %v438
      %547 = vmatprep.subr.bf16.mxu0 0
      %548 = vmatpush1.bf16.msra.mxu0 %v543
      %549 = vmatprep.subr.bf16.mxu0 0
      %550 = vmatpush1.bf16.msra.mxu0 0
      %551 = vmatprep.subr.bf16.mxu0 0
      %552 = vmatpush1.bf16.msra.mxu0 0
      %553 = vmatprep.subr.bf16.mxu0 0
      %554 = vmatpush1.bf16.msra.mxu0 0
      %555 = vmatprep.subr.bf16.mxu0 0
      %556 = vmatpush1.bf16.msra.mxu0 0
      %557 = vmatprep.subr.bf16.mxu0 0
      %558 = vmatpush1.bf16.msra.mxu0 0
      %559 = vmatprep.subr.bf16.mxu0 0
      %560 = vmatpush1.bf16.msra.mxu0 0
      %561 = vmatprep.subr.bf16.mxu0 0
      %562 = vmatpush1.bf16.msra.mxu0 0
      %563 = vmatprep.subr.bf16.mxu0 0
      %564 = vmatpush1.bf16.msra.mxu0 0
      %565 = vmatprep.subr.bf16.mxu0 0
      %566 = vmatpush1.bf16.msra.mxu0 0
      %567 = vmatprep.subr.bf16.mxu0 0
      %568 = vmatpush1.bf16.msra.mxu0 0
      %569 = vmatprep.subr.bf16.mxu0 0
      %570 = vmatpush1.bf16.msra.mxu0 0
      %571 = vmatprep.subr.bf16.mxu0 0
      %572 = vmatpush1.bf16.msra.mxu0 0
      %573 = vmatprep.subr.bf16.mxu0 0
      %574 = vmatpush1.bf16.msra.mxu0 0
      %575 = vmatprep.subr.bf16.mxu0 0
      %576 = vmatpush1.bf16.msra.mxu0 0
      %577 = vmatprep.mubr.bf16.mxu0 0
      %578 = vmatmul.mubr.bf16.gmra.mrb[0].mxu0 %v443
      %v579 = vpop.f32.mrb[0].mxu0
      %v580 = vadd.f32 0.0, %v579
      %v581 = vpop.f32.mrb[0].mxu0
      %v582 = vpop.f32.mrb[0].mxu0
      %v583 = vadd.f32 0.0, %v582
      %v584 = vpop.f32.mrb[0].mxu0
      %585 = vmatprep.mubr.bf16.mxu0 0
      %586 = vmatmul.mubr.bf16.gmra.mrb[0].mxu0 %v446
      %v587 = vpop.f32.mrb[0].mxu0
      %v588 = vadd.f32 0.0, %v587
      %v589 = vpop.f32.mrb[0].mxu0
      %v590 = vpop.f32.mrb[0].mxu0
      %v591 = vadd.f32 0.0, %v590
      %v592 = vpop.f32.mrb[0].mxu0
      %593 = vmatprep.mubr.bf16.mxu0 0
      %594 = vmatmul.mubr.bf16.gmra.mrb[0].mxu0 %v449
      %v595 = vpop.f32.mrb[0].mxu0
      %v596 = vadd.f32 0.0, %v595
      %v597 = vpop.f32.mrb[0].mxu0
      %v598 = vpop.f32.mrb[0].mxu0
      %v599 = vadd.f32 0.0, %v598
      %v600 = vpop.f32.mrb[0].mxu0
      %601 = vmatprep.mubr.bf16.mxu0 0
      %602 = vmatmul.mubr.bf16.gmra.mrb[0].mxu0 %v452
      %v603 = vpop.f32.mrb[0].mxu0
      %v604 = vadd.f32 0.0, %v603
      %v605 = vpop.f32.mrb[0].mxu0
      %v606 = vpop.f32.mrb[0].mxu0
      %v607 = vadd.f32 0.0, %v606
      %v608 = vpop.f32.mrb[0].mxu0
      %609 = vmatprep.mubr.bf16.mxu0 0
      %610 = vmatmul.mubr.bf16.gmra.mrb[0].mxu0 %v455
      %v611 = vpop.f32.mrb[0].mxu0
      %v612 = vadd.f32 0.0, %v611
      %v613 = vpop.f32.mrb[0].mxu0
      %v614 = vpop.f32.mrb[0].mxu0
      %v615 = vadd.f32 0.0, %v614
      %v616 = vpop.f32.mrb[0].mxu0
      %617 = vmatprep.mubr.bf16.mxu0 0
      %618 = vmatmul.mubr.bf16.gmra.mrb[0].mxu0 %v458
      %v619 = vpop.f32.mrb[0].mxu0
      %v620 = vadd.f32 0.0, %v619
      %v621 = vpop.f32.mrb[0].mxu0
      %v622 = vpop.f32.mrb[0].mxu0
      %v623 = vadd.f32 0.0, %v622
      %v624 = vpop.f32.mrb[0].mxu0
      %625 = vmatprep.mubr.bf16.mxu0 0
      %626 = vmatmul.mubr.bf16.gmra.mrb[0].mxu0 %v461
      %v627 = vpop.f32.mrb[0].mxu0
      %v628 = vadd.f32 0.0, %v627
      %v629 = vpop.f32.mrb[0].mxu0
      %v630 = vpop.f32.mrb[0].mxu0
      %v631 = vadd.f32 0.0, %v630
      %v632 = vpop.f32.mrb[0].mxu0
      %633 = vmatprep.mubr.bf16.mxu0 0
      %634 = vmatmul.mubr.bf16.gmra.mrb[0].mxu0 %v464
      %v635 = vpop.f32.mrb[0].mxu0
      %v636 = vadd.f32 0.0, %v635
      %v637 = vpop.f32.mrb[0].mxu0
      %v638 = vpop.f32.mrb[0].mxu0
      %v639 = vadd.f32 0.0, %v638
      %v640 = vpop.f32.mrb[0].mxu0
      %641 = vmatprep.mubr.bf16.mxu0 0
      %642 = vmatmul.mubr.bf16.gmra.mrb[0].mxu0 %v467
      %v643 = vpop.f32.mrb[0].mxu0
      %v644 = vadd.f32 0.0, %v643
      %v645 = vpop.f32.mrb[0].mxu0
      %v646 = vpop.f32.mrb[0].mxu0
      %v647 = vadd.f32 0.0, %v646
      %v648 = vpop.f32.mrb[0].mxu0
      %649 = vmatprep.mubr.bf16.mxu0 0
      %650 = vmatmul.mubr.bf16.gmra.mrb[0].mxu0 %v470
      %v651 = vpop.f32.mrb[0].mxu0
      %v652 = vadd.f32 0.0, %v651
      %v653 = vpop.f32.mrb[0].mxu0
      %v654 = vpop.f32.mrb[0].mxu0
      %v655 = vadd.f32 0.0, %v654
      %v656 = vpop.f32.mrb[0].mxu0
      %657 = vmatprep.mubr.bf16.mxu0 0
      %658 = vmatmul.mubr.bf16.gmra.mrb[0].mxu0 %v473
      %v659 = vpop.f32.mrb[0].mxu0
      %v660 = vadd.f32 0.0, %v659
      %v661 = vpop.f32.mrb[0].mxu0
      %v662 = vpop.f32.mrb[0].mxu0
      %v663 = vadd.f32 0.0, %v662
      %v664 = vpop.f32.mrb[0].mxu0
      %665 = vmatprep.mubr.bf16.mxu0 0
      %666 = vmatmul.mubr.bf16.gmra.mrb[0].mxu0 %v476
      %v667 = vpop.f32.mrb[0].mxu0
      %v668 = vadd.f32 0.0, %v667
      %v669 = vpop.f32.mrb[0].mxu0
      %v670 = vpop.f32.mrb[0].mxu0
      %v671 = vadd.f32 0.0, %v670
      %v672 = vpop.f32.mrb[0].mxu0
      %673 = vmatprep.mubr.bf16.mxu0 0
      %674 = vmatmul.mubr.bf16.gmra.mrb[0].mxu0 %v479
      %v675 = vpop.f32.mrb[0].mxu0
      %v676 = vadd.f32 0.0, %v675
      %v677 = vpop.f32.mrb[0].mxu0
      %v678 = vpop.f32.mrb[0].mxu0
      %v679 = vadd.f32 0.0, %v678
      %v680 = vpop.f32.mrb[0].mxu0
      %681 = vmatprep.mubr.bf16.mxu0 0
      %682 = vmatmul.mubr.bf16.gmra.mrb[0].mxu0 %v482
      %v683 = vpop.f32.mrb[0].mxu0
      %v684 = vadd.f32 0.0, %v683
      %v685 = vpop.f32.mrb[0].mxu0
      %v686 = vpop.f32.mrb[0].mxu0
      %v687 = vadd.f32 0.0, %v686
      %v688 = vpop.f32.mrb[0].mxu0
      %689 = vmatprep.mubr.bf16.mxu0 0
      %690 = vmatmul.mubr.bf16.gmra.mrb[0].mxu0 %v485
      %v691 = vpop.f32.mrb[0].mxu0
      %v692 = vadd.f32 0.0, %v691
      %v693 = vpop.f32.mrb[0].mxu0
      %v694 = vpop.f32.mrb[0].mxu0
      %v695 = vadd.f32 0.0, %v694
      %v696 = vpop.f32.mrb[0].mxu0
      %697 = vmatprep.mubr.bf16.mxu0 0
      %698 = vmatmul.mubr.bf16.gmra.mrb[0].mxu0 %v488
      %v699 = vpop.f32.mrb[0].mxu0
      %v700 = vadd.f32 0.0, %v699
      %v701 = vpop.f32.mrb[0].mxu0
      %v702 = vpop.f32.mrb[0].mxu0
      %v703 = vadd.f32 0.0, %v702
      %v704 = vpop.f32.mrb[0].mxu0
      %705 = vmatprep.mubr.bf16.mxu0 0
      %706 = vmatmul.mubr.bf16.gmra.mrb[0].mxu0 %v491
      %v707 = vpop.f32.mrb[0].mxu0
      %v708 = vadd.f32 0.0, %v707
      %v709 = vpop.f32.mrb[0].mxu0
      %v710 = vpop.f32.mrb[0].mxu0
      %v711 = vadd.f32 0.0, %v710
      %v712 = vpop.f32.mrb[0].mxu0
      %713 = vmatprep.mubr.bf16.mxu0 0
      %714 = vmatmul.mubr.bf16.gmra.mrb[0].mxu0 %v494
      %v715 = vpop.f32.mrb[0].mxu0
      %v716 = vadd.f32 0.0, %v715
      %v717 = vpop.f32.mrb[0].mxu0
      %v718 = vpop.f32.mrb[0].mxu0
      %v719 = vadd.f32 0.0, %v718
      %v720 = vpop.f32.mrb[0].mxu0
      %721 = vmatprep.mubr.bf16.mxu0 0
      %722 = vmatmul.mubr.bf16.gmra.mrb[0].mxu0 %v497
      %v723 = vpop.f32.mrb[0].mxu0
      %v724 = vadd.f32 0.0, %v723
      %v725 = vpop.f32.mrb[0].mxu0
      %v726 = vpop.f32.mrb[0].mxu0
      %v727 = vadd.f32 0.0, %v726
      %v728 = vpop.f32.mrb[0].mxu0
      %729 = vmatprep.mubr.bf16.mxu0 0
      %730 = vmatmul.mubr.bf16.gmra.mrb[0].mxu0 %v500
      %v731 = vpop.f32.mrb[0].mxu0
      %v732 = vadd.f32 0.0, %v731
      %v733 = vpop.f32.mrb[0].mxu0
      %v734 = vpop.f32.mrb[0].mxu0
      %v735 = vadd.f32 0.0, %v734
      %v736 = vpop.f32.mrb[0].mxu0
      %737 = vmatprep.mubr.bf16.mxu0 0
      %738 = vmatmul.mubr.bf16.gmra.mrb[0].mxu0 %v503
      %v739 = vpop.f32.mrb[0].mxu0
      %v740 = vadd.f32 0.0, %v739
      %v741 = vpop.f32.mrb[0].mxu0
      %v742 = vpop.f32.mrb[0].mxu0
      %v743 = vadd.f32 0.0, %v742
      %v744 = vpop.f32.mrb[0].mxu0
      %745 = vmatprep.mubr.bf16.mxu0 0
      %746 = vmatmul.mubr.bf16.gmra.mrb[0].mxu0 %v506
      %v747 = vpop.f32.mrb[0].mxu0
      %v748 = vadd.f32 0.0, %v747
      %v749 = vpop.f32.mrb[0].mxu0
      %v750 = vpop.f32.mrb[0].mxu0
      %v751 = vadd.f32 0.0, %v750
      %v752 = vpop.f32.mrb[0].mxu0
      %753 = vmatprep.mubr.bf16.mxu0 0
      %754 = vmatmul.mubr.bf16.gmra.mrb[0].mxu0 %v509
      %v755 = vpop.f32.mrb[0].mxu0
      %v756 = vadd.f32 0.0, %v755
      %v757 = vpop.f32.mrb[0].mxu0
      %v758 = vpop.f32.mrb[0].mxu0
      %v759 = vadd.f32 0.0, %v758
      %v760 = vpop.f32.mrb[0].mxu0
      %761 = vmatprep.mubr.bf16.mxu0 0
      %762 = vmatmul.mubr.bf16.gmra.mrb[0].mxu0 %v512
      %v763 = vpop.f32.mrb[0].mxu0
      %v764 = vadd.f32 0.0, %v763
      %v765 = vpop.f32.mrb[0].mxu0
      %v766 = vpop.f32.mrb[0].mxu0
      %v767 = vadd.f32 0.0, %v766
      %v768 = vpop.f32.mrb[0].mxu0
      %769 = vmatprep.mubr.bf16.mxu0 0
      %770 = vmatmul.mubr.bf16.gmra.mrb[0].mxu0 %v515
      %v771 = vpop.f32.mrb[0].mxu0
      %v772 = vadd.f32 0.0, %v771
      %v773 = vpop.f32.mrb[0].mxu0
      %v774 = vpop.f32.mrb[0].mxu0
      %v775 = vadd.f32 0.0, %v774
      %v776 = vpop.f32.mrb[0].mxu0
      %777 = vmatprep.mubr.bf16.mxu0 0
      %778 = vmatmul.mubr.bf16.gmra.mrb[0].mxu0 %v518
      %v779 = vpop.f32.mrb[0].mxu0
      %v780 = vadd.f32 0.0, %v779
      %v781 = vpop.f32.mrb[0].mxu0
      %v782 = vpop.f32.mrb[0].mxu0
      %v783 = vadd.f32 0.0, %v782
      %v784 = vpop.f32.mrb[0].mxu0
      %785 = vmatprep.mubr.bf16.mxu0 0
      %786 = vmatmul.mubr.bf16.gmra.mrb[0].mxu0 %v521
      %v787 = vpop.f32.mrb[0].mxu0
      %v788 = vadd.f32 0.0, %v787
      %v789 = vpop.f32.mrb[0].mxu0
      %v790 = vpop.f32.mrb[0].mxu0
      %v791 = vadd.f32 0.0, %v790
      %v792 = vpop.f32.mrb[0].mxu0
      %793 = vmatprep.mubr.bf16.mxu0 0
      %794 = vmatmul.mubr.bf16.gmra.mrb[0].mxu0 %v524
      %v795 = vpop.f32.mrb[0].mxu0
      %v796 = vadd.f32 0.0, %v795
      %v797 = vpop.f32.mrb[0].mxu0
      %v798 = vpop.f32.mrb[0].mxu0
      %v799 = vadd.f32 0.0, %v798
      %v800 = vpop.f32.mrb[0].mxu0
      %801 = vmatprep.mubr.bf16.mxu0 0
      %802 = vmatmul.mubr.bf16.gmra.mrb[0].mxu0 %v527
      %v803 = vpop.f32.mrb[0].mxu0
      %v804 = vadd.f32 0.0, %v803
      %v805 = vpop.f32.mrb[0].mxu0
      %v806 = vpop.f32.mrb[0].mxu0
      %v807 = vadd.f32 0.0, %v806
      %v808 = vpop.f32.mrb[0].mxu0
      %809 = vmatprep.mubr.bf16.mxu0 0
      %810 = vmatmul.mubr.bf16.gmra.mrb[0].mxu0 %v530
      %v811 = vpop.f32.mrb[0].mxu0
      %v812 = vadd.f32 0.0, %v811
      %v813 = vpop.f32.mrb[0].mxu0
      %v814 = vpop.f32.mrb[0].mxu0
      %v815 = vadd.f32 0.0, %v814
      %v816 = vpop.f32.mrb[0].mxu0
      %817 = vmatprep.mubr.bf16.mxu0 0
      %818 = vmatmul.mubr.bf16.gmra.mrb[0].mxu0 %v533
      %v819 = vpop.f32.mrb[0].mxu0
      %v820 = vadd.f32 0.0, %v819
      %v821 = vpop.f32.mrb[0].mxu0
      %v822 = vpop.f32.mrb[0].mxu0
      %v823 = vadd.f32 0.0, %v822
      %v824 = vpop.f32.mrb[0].mxu0
      %825 = vmatprep.mubr.bf16.mxu0 0
      %826 = vmatmul.mubr.bf16.gmra.mrb[0].mxu0 %v536
      %v827 = vpop.f32.mrb[0].mxu0
      %v828 = vadd.f32 0.0, %v827
      %v829 = vpop.f32.mrb[0].mxu0
      %v830 = vpop.f32.mrb[0].mxu0
      %v831 = vadd.f32 0.0, %v830
      %v832 = vpop.f32.mrb[0].mxu0
      %833 = vdwg.mxu0
      %v834 = vld [vmem:[%s2] sm:$0x1]
      %v836 = vlaneseq
      %v837 = vshrl.u32 %v836, 7
      %v838 = vsub.s32 0, %v837
      %v839 = vrot.slane %v834, %v838
      %v841 = vmul.f32 %v580, %v839
      %v842 = vmul.f32 %v583, %v839
      %v843 = vmul.f32 %v588, %v839
      %v844 = vmul.f32 %v591, %v839
      %v845 = vmul.f32 %v596, %v839
      %v846 = vmul.f32 %v599, %v839
      %v847 = vmul.f32 %v604, %v839
      %v848 = vmul.f32 %v607, %v839
      %v849 = vmul.f32 %v612, %v839
      %v850 = vmul.f32 %v615, %v839
      %v851 = vmul.f32 %v620, %v839
      %v852 = vmul.f32 %v623, %v839
      %v853 = vmul.f32 %v628, %v839
      %v854 = vmul.f32 %v631, %v839
      %v855 = vmul.f32 %v636, %v839
      %v856 = vmul.f32 %v639, %v839
      %v857 = vmul.f32 %v644, %v839
      %v858 = vmul.f32 %v647, %v839
      %v859 = vmul.f32 %v652, %v839
      %v860 = vmul.f32 %v655, %v839
      %v861 = vmul.f32 %v660, %v839
      %v862 = vmul.f32 %v663, %v839
      %v863 = vmul.f32 %v668, %v839
      %v864 = vmul.f32 %v671, %v839
      %v865 = vmul.f32 %v676, %v839
      %v866 = vmul.f32 %v679, %v839
      %v867 = vmul.f32 %v684, %v839
      %v868 = vmul.f32 %v687, %v839
      %v869 = vmul.f32 %v692, %v839
      %v870 = vmul.f32 %v695, %v839
      %v871 = vmul.f32 %v700, %v839
      %v872 = vmul.f32 %v703, %v839
      %v873 = vmul.f32 %v708, %v839
      %v874 = vmul.f32 %v711, %v839
      %v875 = vmul.f32 %v716, %v839
      %v876 = vmul.f32 %v719, %v839
      %v877 = vmul.f32 %v724, %v839
      %v878 = vmul.f32 %v727, %v839
      %v879 = vmul.f32 %v732, %v839
      %v880 = vmul.f32 %v735, %v839
      %v881 = vmul.f32 %v740, %v839
      %v882 = vmul.f32 %v743, %v839
      %v883 = vmul.f32 %v748, %v839
      %v884 = vmul.f32 %v751, %v839
      %v885 = vmul.f32 %v756, %v839
      %v886 = vmul.f32 %v759, %v839
      %v887 = vmul.f32 %v764, %v839
      %v888 = vmul.f32 %v767, %v839
      %v889 = vmul.f32 %v772, %v839
      %v890 = vmul.f32 %v775, %v839
      %v891 = vmul.f32 %v780, %v839
      %v892 = vmul.f32 %v783, %v839
      %v893 = vmul.f32 %v788, %v839
      %v894 = vmul.f32 %v791, %v839
      %v895 = vmul.f32 %v796, %v839
      %v896 = vmul.f32 %v799, %v839
      %v897 = vmul.f32 %v804, %v839
      %v898 = vmul.f32 %v807, %v839
      %v899 = vmul.f32 %v812, %v839
      %v900 = vmul.f32 %v815, %v839
      %v901 = vmul.f32 %v820, %v839
      %v902 = vmul.f32 %v823, %v839
      %v903 = vmul.f32 %v828, %v839
      %v904 = vmul.f32 %v831, %v839
      %v905 = vld [vmem:[%s3] sm:$0x1]
      %v907 = vlaneseq
      %v908 = vshrl.u32 %v907, 7
      %v909 = vsub.s32 0, %v908
      %v910 = vrot.slane %v905, %v909
      %v912 = vadd.f32 %v841, %v910
      %v913 = vadd.f32 %v842, %v910
      %v914 = vadd.f32 %v843, %v910
      %v915 = vadd.f32 %v844, %v910
      %v916 = vadd.f32 %v845, %v910
      %v917 = vadd.f32 %v846, %v910
      %v918 = vadd.f32 %v847, %v910
      %v919 = vadd.f32 %v848, %v910
      %v920 = vadd.f32 %v849, %v910
      %v921 = vadd.f32 %v850, %v910
      %v922 = vadd.f32 %v851, %v910
      %v923 = vadd.f32 %v852, %v910
      %v924 = vadd.f32 %v853, %v910
      %v925 = vadd.f32 %v854, %v910
      %v926 = vadd.f32 %v855, %v910
      %v927 = vadd.f32 %v856, %v910
      %v928 = vadd.f32 %v857, %v910
      %v929 = vadd.f32 %v858, %v910
      %v930 = vadd.f32 %v859, %v910
      %v931 = vadd.f32 %v860, %v910
      %v932 = vadd.f32 %v861, %v910
      %v933 = vadd.f32 %v862, %v910
      %v934 = vadd.f32 %v863, %v910
      %v935 = vadd.f32 %v864, %v910
      %v936 = vadd.f32 %v865, %v910
      %v937 = vadd.f32 %v866, %v910
      %v938 = vadd.f32 %v867, %v910
      %v939 = vadd.f32 %v868, %v910
      %v940 = vadd.f32 %v869, %v910
      %v941 = vadd.f32 %v870, %v910
      %v942 = vadd.f32 %v871, %v910
      %v943 = vadd.f32 %v872, %v910
      %v944 = vadd.f32 %v873, %v910
      %v945 = vadd.f32 %v874, %v910
      %v946 = vadd.f32 %v875, %v910
      %v947 = vadd.f32 %v876, %v910
      %v948 = vadd.f32 %v877, %v910
      %v949 = vadd.f32 %v878, %v910
      %v950 = vadd.f32 %v879, %v910
      %v951 = vadd.f32 %v880, %v910
      %v952 = vadd.f32 %v881, %v910
      %v953 = vadd.f32 %v882, %v910
      %v954 = vadd.f32 %v883, %v910
      %v955 = vadd.f32 %v884, %v910
      %v956 = vadd.f32 %v885, %v910
      %v957 = vadd.f32 %v886, %v910
      %v958 = vadd.f32 %v887, %v910
      %v959 = vadd.f32 %v888, %v910
      %v960 = vadd.f32 %v889, %v910
      %v961 = vadd.f32 %v890, %v910
      %v962 = vadd.f32 %v891, %v910
      %v963 = vadd.f32 %v892, %v910
      %v964 = vadd.f32 %v893, %v910
      %v965 = vadd.f32 %v894, %v910
      %v966 = vadd.f32 %v895, %v910
      %v967 = vadd.f32 %v896, %v910
      %v968 = vadd.f32 %v897, %v910
      %v969 = vadd.f32 %v898, %v910
      %v970 = vadd.f32 %v899, %v910
      %v971 = vadd.f32 %v900, %v910
      %v972 = vadd.f32 %v901, %v910
      %v973 = vadd.f32 %v902, %v910
      %v974 = vadd.f32 %v903, %v910
      %v975 = vadd.f32 %v904, %v910
      %v976 = vmax.f32 %v912, 0.0
      %v977 = vmax.f32 %v913, 0.0
      %v978 = vmax.f32 %v914, 0.0
      %v979 = vmax.f32 %v915, 0.0
      %v980 = vmax.f32 %v916, 0.0
      %v981 = vmax.f32 %v917, 0.0
      %v982 = vmax.f32 %v918, 0.0
      %v983 = vmax.f32 %v919, 0.0
      %v984 = vmax.f32 %v920, 0.0
      %v985 = vmax.f32 %v921, 0.0
      %v986 = vmax.f32 %v922, 0.0
      %v987 = vmax.f32 %v923, 0.0
      %v988 = vmax.f32 %v924, 0.0
      %v989 = vmax.f32 %v925, 0.0
      %v990 = vmax.f32 %v926, 0.0
      %v991 = vmax.f32 %v927, 0.0
      %v992 = vmax.f32 %v928, 0.0
      %v993 = vmax.f32 %v929, 0.0
      %v994 = vmax.f32 %v930, 0.0
      %v995 = vmax.f32 %v931, 0.0
      %v996 = vmax.f32 %v932, 0.0
      %v997 = vmax.f32 %v933, 0.0
      %v998 = vmax.f32 %v934, 0.0
      %v999 = vmax.f32 %v935, 0.0
      %v1000 = vmax.f32 %v936, 0.0
      %v1001 = vmax.f32 %v937, 0.0
      %v1002 = vmax.f32 %v938, 0.0
      %v1003 = vmax.f32 %v939, 0.0
      %v1004 = vmax.f32 %v940, 0.0
      %v1005 = vmax.f32 %v941, 0.0
      %v1006 = vmax.f32 %v942, 0.0
      %v1007 = vmax.f32 %v943, 0.0
      %v1008 = vmax.f32 %v944, 0.0
      %v1009 = vmax.f32 %v945, 0.0
      %v1010 = vmax.f32 %v946, 0.0
      %v1011 = vmax.f32 %v947, 0.0
      %v1012 = vmax.f32 %v948, 0.0
      %v1013 = vmax.f32 %v949, 0.0
      %v1014 = vmax.f32 %v950, 0.0
      %v1015 = vmax.f32 %v951, 0.0
      %v1016 = vmax.f32 %v952, 0.0
      %v1017 = vmax.f32 %v953, 0.0
      %v1018 = vmax.f32 %v954, 0.0
      %v1019 = vmax.f32 %v955, 0.0
      %v1020 = vmax.f32 %v956, 0.0
      %v1021 = vmax.f32 %v957, 0.0
      %v1022 = vmax.f32 %v958, 0.0
      %v1023 = vmax.f32 %v959, 0.0
      %v1024 = vmax.f32 %v960, 0.0
      %v1025 = vmax.f32 %v961, 0.0
      %v1026 = vmax.f32 %v962, 0.0
      %v1027 = vmax.f32 %v963, 0.0
      %v1028 = vmax.f32 %v964, 0.0
      %v1029 = vmax.f32 %v965, 0.0
      %v1030 = vmax.f32 %v966, 0.0
      %v1031 = vmax.f32 %v967, 0.0
      %v1032 = vmax.f32 %v968, 0.0
      %v1033 = vmax.f32 %v969, 0.0
      %v1034 = vmax.f32 %v970, 0.0
      %v1035 = vmax.f32 %v971, 0.0
      %v1036 = vmax.f32 %v972, 0.0
      %v1037 = vmax.f32 %v973, 0.0
      %v1038 = vmax.f32 %v974, 0.0
      %v1039 = vmax.f32 %v975, 0.0
      %v1040 = vmin.f32 %v976, 6.0
      %v1041 = vmin.f32 %v977, 6.0
      %v1042 = vmin.f32 %v978, 6.0
      %v1043 = vmin.f32 %v979, 6.0
      %v1044 = vmin.f32 %v980, 6.0
      %v1045 = vmin.f32 %v981, 6.0
      %v1046 = vmin.f32 %v982, 6.0
      %v1047 = vmin.f32 %v983, 6.0
      %v1048 = vmin.f32 %v984, 6.0
      %v1049 = vmin.f32 %v985, 6.0
      %v1050 = vmin.f32 %v986, 6.0
      %v1051 = vmin.f32 %v987, 6.0
      %v1052 = vmin.f32 %v988, 6.0
      %v1053 = vmin.f32 %v989, 6.0
      %v1054 = vmin.f32 %v990, 6.0
      %v1055 = vmin.f32 %v991, 6.0
      %v1056 = vmin.f32 %v992, 6.0
      %v1057 = vmin.f32 %v993, 6.0
      %v1058 = vmin.f32 %v994, 6.0
      %v1059 = vmin.f32 %v995, 6.0
      %v1060 = vmin.f32 %v996, 6.0
      %v1061 = vmin.f32 %v997, 6.0
      %v1062 = vmin.f32 %v998, 6.0
      %v1063 = vmin.f32 %v999, 6.0
      %v1064 = vmin.f32 %v1000, 6.0
      %v1065 = vmin.f32 %v1001, 6.0
      %v1066 = vmin.f32 %v1002, 6.0
      %v1067 = vmin.f32 %v1003, 6.0
      %v1068 = vmin.f32 %v1004, 6.0
      %v1069 = vmin.f32 %v1005, 6.0
      %v1070 = vmin.f32 %v1006, 6.0
      %v1071 = vmin.f32 %v1007, 6.0
      %v1072 = vmin.f32 %v1008, 6.0
      %v1073 = vmin.f32 %v1009, 6.0
      %v1074 = vmin.f32 %v1010, 6.0
      %v1075 = vmin.f32 %v1011, 6.0
      %v1076 = vmin.f32 %v1012, 6.0
      %v1077 = vmin.f32 %v1013, 6.0
      %v1078 = vmin.f32 %v1014, 6.0
      %v1079 = vmin.f32 %v1015, 6.0
      %v1080 = vmin.f32 %v1016, 6.0
      %v1081 = vmin.f32 %v1017, 6.0
      %v1082 = vmin.f32 %v1018, 6.0
      %v1083 = vmin.f32 %v1019, 6.0
      %v1084 = vmin.f32 %v1020, 6.0
      %v1085 = vmin.f32 %v1021, 6.0
      %v1086 = vmin.f32 %v1022, 6.0
      %v1087 = vmin.f32 %v1023, 6.0
      %v1088 = vmin.f32 %v1024, 6.0
      %v1089 = vmin.f32 %v1025, 6.0
      %v1090 = vmin.f32 %v1026, 6.0
      %v1091 = vmin.f32 %v1027, 6.0
      %v1092 = vmin.f32 %v1028, 6.0
      %v1093 = vmin.f32 %v1029, 6.0
      %v1094 = vmin.f32 %v1030, 6.0
      %v1095 = vmin.f32 %v1031, 6.0
      %v1096 = vmin.f32 %v1032, 6.0
      %v1097 = vmin.f32 %v1033, 6.0
      %v1098 = vmin.f32 %v1034, 6.0
      %v1099 = vmin.f32 %v1035, 6.0
      %v1100 = vmin.f32 %v1036, 6.0
      %v1101 = vmin.f32 %v1037, 6.0
      %v1102 = vmin.f32 %v1038, 6.0
      %v1103 = vmin.f32 %v1039, 6.0
      %v1104 = vpack.c.bf16 %v1041, %v1040
      %v1105 = vpack.c.bf16 %v1043, %v1042
      %v1106 = vpack.c.bf16 %v1045, %v1044
      %v1107 = vpack.c.bf16 %v1047, %v1046
      %v1108 = vpack.c.bf16 %v1049, %v1048
      %v1109 = vpack.c.bf16 %v1051, %v1050
      %v1110 = vpack.c.bf16 %v1053, %v1052
      %v1111 = vpack.c.bf16 %v1055, %v1054
      %v1112 = vpack.c.bf16 %v1057, %v1056
      %v1113 = vpack.c.bf16 %v1059, %v1058
      %v1114 = vpack.c.bf16 %v1061, %v1060
      %v1115 = vpack.c.bf16 %v1063, %v1062
      %v1116 = vpack.c.bf16 %v1065, %v1064
      %v1117 = vpack.c.bf16 %v1067, %v1066
      %v1118 = vpack.c.bf16 %v1069, %v1068
      %v1119 = vpack.c.bf16 %v1071, %v1070
      %v1120 = vpack.c.bf16 %v1073, %v1072
      %v1121 = vpack.c.bf16 %v1075, %v1074
      %v1122 = vpack.c.bf16 %v1077, %v1076
      %v1123 = vpack.c.bf16 %v1079, %v1078
      %v1124 = vpack.c.bf16 %v1081, %v1080
      %v1125 = vpack.c.bf16 %v1083, %v1082
      %v1126 = vpack.c.bf16 %v1085, %v1084
      %v1127 = vpack.c.bf16 %v1087, %v1086
      %v1128 = vpack.c.bf16 %v1089, %v1088
      %v1129 = vpack.c.bf16 %v1091, %v1090
      %v1130 = vpack.c.bf16 %v1093, %v1092
      %v1131 = vpack.c.bf16 %v1095, %v1094
      %v1132 = vpack.c.bf16 %v1097, %v1096
      %v1133 = vpack.c.bf16 %v1099, %v1098
      %v1134 = vpack.c.bf16 %v1101, %v1100
      %v1135 = vpack.c.bf16 %v1103, %v1102
      %v1168 = vunpack.c.l.b16 %v1104
      %v1169 = vunpack.c.h.b16 %v1104
      %v1170 = vunpack.c.l.b16 %v1105
      %v1171 = vunpack.c.h.b16 %v1105
      %v1172 = vunpack.c.l.b16 %v1106
      %v1173 = vunpack.c.h.b16 %v1106
      %v1174 = vunpack.c.l.b16 %v1107
      %v1175 = vunpack.c.h.b16 %v1107
      %v1176 = vunpack.c.l.b16 %v1108
      %v1177 = vunpack.c.h.b16 %v1108
      %v1178 = vunpack.c.l.b16 %v1109
      %v1179 = vunpack.c.h.b16 %v1109
      %v1180 = vunpack.c.l.b16 %v1110
      %v1181 = vunpack.c.h.b16 %v1110
      %v1182 = vunpack.c.l.b16 %v1111
      %v1183 = vunpack.c.h.b16 %v1111
      %v1184 = vunpack.c.l.b16 %v1112
      %v1185 = vunpack.c.h.b16 %v1112
      %v1186 = vunpack.c.l.b16 %v1113
      %v1187 = vunpack.c.h.b16 %v1113
      %v1188 = vunpack.c.l.b16 %v1114
      %v1189 = vunpack.c.h.b16 %v1114
      %v1190 = vunpack.c.l.b16 %v1115
      %v1191 = vunpack.c.h.b16 %v1115
      %v1192 = vunpack.c.l.b16 %v1116
      %v1193 = vunpack.c.h.b16 %v1116
      %v1194 = vunpack.c.l.b16 %v1117
      %v1195 = vunpack.c.h.b16 %v1117
      %v1196 = vunpack.c.l.b16 %v1118
      %v1197 = vunpack.c.h.b16 %v1118
      %v1198 = vunpack.c.l.b16 %v1119
      %v1199 = vunpack.c.h.b16 %v1119
      %v1200 = vunpack.c.l.b16 %v1120
      %v1201 = vunpack.c.h.b16 %v1120
      %v1202 = vunpack.c.l.b16 %v1121
      %v1203 = vunpack.c.h.b16 %v1121
      %v1204 = vunpack.c.l.b16 %v1122
      %v1205 = vunpack.c.h.b16 %v1122
      %v1206 = vunpack.c.l.b16 %v1123
      %v1207 = vunpack.c.h.b16 %v1123
      %v1208 = vunpack.c.l.b16 %v1124
      %v1209 = vunpack.c.h.b16 %v1124
      %v1210 = vunpack.c.l.b16 %v1125
      %v1211 = vunpack.c.h.b16 %v1125
      %v1212 = vunpack.c.l.b16 %v1126
      %v1213 = vunpack.c.h.b16 %v1126
      %v1214 = vunpack.c.l.b16 %v1127
      %v1215 = vunpack.c.h.b16 %v1127
      %v1216 = vunpack.c.l.b16 %v1128
      %v1217 = vunpack.c.h.b16 %v1128
      %v1218 = vunpack.c.l.b16 %v1129
      %v1219 = vunpack.c.h.b16 %v1129
      %v1220 = vunpack.c.l.b16 %v1130
      %v1221 = vunpack.c.h.b16 %v1130
      %v1222 = vunpack.c.l.b16 %v1131
      %v1223 = vunpack.c.h.b16 %v1131
      %v1224 = vunpack.c.l.b16 %v1132
      %v1225 = vunpack.c.h.b16 %v1132
      %v1226 = vunpack.c.l.b16 %v1133
      %v1227 = vunpack.c.h.b16 %v1133
      %v1228 = vunpack.c.l.b16 %v1134
      %v1229 = vunpack.c.h.b16 %v1134
      %v1230 = vunpack.c.l.b16 %v1135
      %v1231 = vunpack.c.h.b16 %v1135
      %v1232 = vpack.c.b16 %v1168, %v1168
      %v1233 = vpack.c.b16 %v1169, %v1169
      %v1234 = vpack.c.b16 %v1170, %v1170
      %v1235 = vpack.c.b16 %v1171, %v1171
      %v1236 = vpack.c.b16 %v1172, %v1172
      %v1237 = vpack.c.b16 %v1173, %v1173
      %v1238 = vpack.c.b16 %v1174, %v1174
      %v1239 = vpack.c.b16 %v1175, %v1175
      %v1240 = vpack.c.b16 %v1176, %v1176
      %v1241 = vpack.c.b16 %v1177, %v1177
      %v1242 = vpack.c.b16 %v1178, %v1178
      %v1243 = vpack.c.b16 %v1179, %v1179
      %v1244 = vpack.c.b16 %v1180, %v1180
      %v1245 = vpack.c.b16 %v1181, %v1181
      %v1246 = vpack.c.b16 %v1182, %v1182
      %v1247 = vpack.c.b16 %v1183, %v1183
      %v1248 = vpack.c.b16 %v1184, %v1184
      %v1249 = vpack.c.b16 %v1185, %v1185
      %v1250 = vpack.c.b16 %v1186, %v1186
      %v1251 = vpack.c.b16 %v1187, %v1187
      %v1252 = vpack.c.b16 %v1188, %v1188
      %v1253 = vpack.c.b16 %v1189, %v1189
      %v1254 = vpack.c.b16 %v1190, %v1190
      %v1255 = vpack.c.b16 %v1191, %v1191
      %v1256 = vpack.c.b16 %v1192, %v1192
      %v1257 = vpack.c.b16 %v1193, %v1193
      %v1258 = vpack.c.b16 %v1194, %v1194
      %v1259 = vpack.c.b16 %v1195, %v1195
      %v1260 = vpack.c.b16 %v1196, %v1196
      %v1261 = vpack.c.b16 %v1197, %v1197
      %v1262 = vpack.c.b16 %v1198, %v1198
      %v1263 = vpack.c.b16 %v1199, %v1199
      %v1264 = vpack.c.b16 %v1200, %v1200
      %v1265 = vpack.c.b16 %v1201, %v1201
      %v1266 = vpack.c.b16 %v1202, %v1202
      %v1267 = vpack.c.b16 %v1203, %v1203
      %v1268 = vpack.c.b16 %v1204, %v1204
      %v1269 = vpack.c.b16 %v1205, %v1205
      %v1270 = vpack.c.b16 %v1206, %v1206
      %v1271 = vpack.c.b16 %v1207, %v1207
      %v1272 = vpack.c.b16 %v1208, %v1208
      %v1273 = vpack.c.b16 %v1209, %v1209
      %v1274 = vpack.c.b16 %v1210, %v1210
      %v1275 = vpack.c.b16 %v1211, %v1211
      %v1276 = vpack.c.b16 %v1212, %v1212
      %v1277 = vpack.c.b16 %v1213, %v1213
      %v1278 = vpack.c.b16 %v1214, %v1214
      %v1279 = vpack.c.b16 %v1215, %v1215
      %v1280 = vpack.c.b16 %v1216, %v1216
      %v1281 = vpack.c.b16 %v1217, %v1217
      %v1282 = vpack.c.b16 %v1218, %v1218
      %v1283 = vpack.c.b16 %v1219, %v1219
      %v1284 = vpack.c.b16 %v1220, %v1220
      %v1285 = vpack.c.b16 %v1221, %v1221
      %v1286 = vpack.c.b16 %v1222, %v1222
      %v1287 = vpack.c.b16 %v1223, %v1223
      %v1288 = vpack.c.b16 %v1224, %v1224
      %v1289 = vpack.c.b16 %v1225, %v1225
      %v1290 = vpack.c.b16 %v1226, %v1226
      %v1291 = vpack.c.b16 %v1227, %v1227
      %v1292 = vpack.c.b16 %v1228, %v1228
      %v1293 = vpack.c.b16 %v1229, %v1229
      %v1294 = vpack.c.b16 %v1230, %v1230
      %v1295 = vpack.c.b16 %v1231, %v1231
      %vm1360 = vcmask 60416
      %1361 = vst.msk [vmem:[%s199] sm:$0xf] %vm1360, %v1232
      %1362 = vst.msk [vmem:[%s199 + $0x4] sm:$0xf] %vm1360, %v1233
      %1363 = vst.msk [vmem:[%s199 + $0x8] sm:$0xf] %vm1360, %v1234
      %1364 = vst.msk [vmem:[%s199 + $0xc] sm:$0xf] %vm1360, %v1235
      %1365 = vst.msk [vmem:[%s199 + $0x10] sm:$0xf] %vm1360, %v1236
      %1366 = vst.msk [vmem:[%s199 + $0x14] sm:$0xf] %vm1360, %v1237
      %1367 = vst.msk [vmem:[%s199 + $0x18] sm:$0xf] %vm1360, %v1238
      %1368 = vst.msk [vmem:[%s199 + $0x1c] sm:$0xf] %vm1360, %v1239
      %1369 = vst.msk [vmem:[%s199 + $0x20] sm:$0xf] %vm1360, %v1240
      %1370 = vst.msk [vmem:[%s199 + $0x24] sm:$0xf] %vm1360, %v1241
      %1371 = vst.msk [vmem:[%s199 + $0x28] sm:$0xf] %vm1360, %v1242
      %1372 = vst.msk [vmem:[%s199 + $0x2c] sm:$0xf] %vm1360, %v1243
      %1373 = vst.msk [vmem:[%s199 + $0x30] sm:$0xf] %vm1360, %v1244
      %1374 = vst.msk [vmem:[%s199 + $0x34] sm:$0xf] %vm1360, %v1245
      %1375 = vst.msk [vmem:[%s199 + $0x38] sm:$0xf] %vm1360, %v1246
      %1376 = vst.msk [vmem:[%s199 + $0x3c] sm:$0xf] %vm1360, %v1247
      %1377 = vst.msk [vmem:[%s199 + $0x40] sm:$0xf] %vm1360, %v1248
      %1378 = vst.msk [vmem:[%s199 + $0x44] sm:$0xf] %vm1360, %v1249
      %1379 = vst.msk [vmem:[%s199 + $0x48] sm:$0xf] %vm1360, %v1250
      %1380 = vst.msk [vmem:[%s199 + $0x4c] sm:$0xf] %vm1360, %v1251
      %1381 = vst.msk [vmem:[%s199 + $0x50] sm:$0xf] %vm1360, %v1252
      %1382 = vst.msk [vmem:[%s199 + $0x54] sm:$0xf] %vm1360, %v1253
      %1383 = vst.msk [vmem:[%s199 + $0x58] sm:$0xf] %vm1360, %v1254
      %1384 = vst.msk [vmem:[%s199 + $0x5c] sm:$0xf] %vm1360, %v1255
      %1385 = vst.msk [vmem:[%s199 + $0x60] sm:$0xf] %vm1360, %v1256
      %1386 = vst.msk [vmem:[%s199 + $0x64] sm:$0xf] %vm1360, %v1257
      %1387 = vst.msk [vmem:[%s199 + $0x68] sm:$0xf] %vm1360, %v1258
      %1388 = vst.msk [vmem:[%s199 + $0x6c] sm:$0xf] %vm1360, %v1259
      %1389 = vst.msk [vmem:[%s199 + $0x70] sm:$0xf] %vm1360, %v1260
      %1390 = vst.msk [vmem:[%s199 + $0x74] sm:$0xf] %vm1360, %v1261
      %1391 = vst.msk [vmem:[%s199 + $0x78] sm:$0xf] %vm1360, %v1262
      %1392 = vst.msk [vmem:[%s199 + $0x7c] sm:$0xf] %vm1360, %v1263
      %1393 = vst.msk [vmem:[%s199 + $0x80] sm:$0xf] %vm1360, %v1264
      %1394 = vst.msk [vmem:[%s199 + $0x84] sm:$0xf] %vm1360, %v1265
      %1395 = vst.msk [vmem:[%s199 + $0x88] sm:$0xf] %vm1360, %v1266
      %1396 = vst.msk [vmem:[%s199 + $0x8c] sm:$0xf] %vm1360, %v1267
      %1397 = vst.msk [vmem:[%s199 + $0x90] sm:$0xf] %vm1360, %v1268
      %1398 = vst.msk [vmem:[%s199 + $0x94] sm:$0xf] %vm1360, %v1269
      %1399 = vst.msk [vmem:[%s199 + $0x98] sm:$0xf] %vm1360, %v1270
      %1400 = vst.msk [vmem:[%s199 + $0x9c] sm:$0xf] %vm1360, %v1271
      %1401 = vst.msk [vmem:[%s199 + $0xa0] sm:$0xf] %vm1360, %v1272
      %1402 = vst.msk [vmem:[%s199 + $0xa4] sm:$0xf] %vm1360, %v1273
      %1403 = vst.msk [vmem:[%s199 + $0xa8] sm:$0xf] %vm1360, %v1274
      %1404 = vst.msk [vmem:[%s199 + $0xac] sm:$0xf] %vm1360, %v1275
      %1405 = vst.msk [vmem:[%s199 + $0xb0] sm:$0xf] %vm1360, %v1276
      %1406 = vst.msk [vmem:[%s199 + $0xb4] sm:$0xf] %vm1360, %v1277
      %1407 = vst.msk [vmem:[%s199 + $0xb8] sm:$0xf] %vm1360, %v1278
      %1408 = vst.msk [vmem:[%s199 + $0xbc] sm:$0xf] %vm1360, %v1279
      %1409 = vst.msk [vmem:[%s199 + $0xc0] sm:$0xf] %vm1360, %v1280
      %1410 = vst.msk [vmem:[%s199 + $0xc4] sm:$0xf] %vm1360, %v1281
      %1411 = vst.msk [vmem:[%s199 + $0xc8] sm:$0xf] %vm1360, %v1282
      %1412 = vst.msk [vmem:[%s199 + $0xcc] sm:$0xf] %vm1360, %v1283
      %1413 = vst.msk [vmem:[%s199 + $0xd0] sm:$0xf] %vm1360, %v1284
      %1414 = vst.msk [vmem:[%s199 + $0xd4] sm:$0xf] %vm1360, %v1285
      %1415 = vst.msk [vmem:[%s199 + $0xd8] sm:$0xf] %vm1360, %v1286
      %1416 = vst.msk [vmem:[%s199 + $0xdc] sm:$0xf] %vm1360, %v1287
      %1417 = vst.msk [vmem:[%s199 + $0xe0] sm:$0xf] %vm1360, %v1288
      %1418 = vst.msk [vmem:[%s199 + $0xe4] sm:$0xf] %vm1360, %v1289
      %1419 = vst.msk [vmem:[%s199 + $0xe8] sm:$0xf] %vm1360, %v1290
      %1420 = vst.msk [vmem:[%s199 + $0xec] sm:$0xf] %vm1360, %v1291
      %1421 = vst.msk [vmem:[%s199 + $0xf0] sm:$0xf] %vm1360, %v1292
      %1422 = vst.msk [vmem:[%s199 + $0xf4] sm:$0xf] %vm1360, %v1293
      %1423 = vst.msk [vmem:[%s199 + $0xf8] sm:$0xf] %vm1360, %v1294
      %1424 = vst.msk [vmem:[%s199 + $0xfc] sm:$0xf] %vm1360, %v1295
      %s1425 = smul.u32 64, %s15
      %p1426 = scmp.lt.s32.totalorder %s1425, 255
      %s1427 = scalar_select %p1426, %s1425, 255
      %s1428 = smul.addr %s1427, 4
      %s1429 = scalar_lea.vmem %s4, %s1428
      // Predicated region
      $region37: #{conv3x3_bn_relu6.1} parent=35 // pred_check
        %p1430 = pneg %p122
      $region38: #{conv3x3_bn_relu6.1} parent=35 // pred_check_branch
        %1432 = sbr.rel (%p1430) target = $region40
      $region39: #{conv3x3_bn_relu6.1} parent=35 // pred_region
        %s1433 = smul.u32 64, %s15
      $region40: #{conv3x3_bn_relu6.1} parent=35 // pred_fallthru
        _
    $region36: #{conv3x3_bn_relu6.1} parent=5 // pred_fallthru
      _
    %p1434 = scmp.le.s32.totalorder 2, %s10
    // Predicated region
    $region41: #{conv3x3_bn_relu6.1} parent=5 // pred_check
      %p1435 = pneg %p1434
    $region42: #{conv3x3_bn_relu6.1} parent=5 // pred_check_branch
      %1437 = sbr.rel (%p1435) target = $region44
    $region43: #{conv3x3_bn_relu6.1} parent=5 // pred_region
      %s1438 = ssub.s32 %s10, 2
      // Predicated region
      $region45: #{conv3x3_bn_relu6.1} parent=43 // pred_check
        %p1439 = pneg %p128
      $region46: #{conv3x3_bn_relu6.1} parent=43 // pred_check_branch
        %1441 = sbr.rel (%p1439) target = $region48
      $region47: #{conv3x3_bn_relu6.1} parent=43 // pred_region
        %s1442 = smul.u32 64, %s16
        %p1443 = scmp.lt.s32.totalorder %s1442, 255
        %s1444 = scalar_select %p1443, %s1442, 255
        %s1445 = smul.addr %s1444, 4
        %s1446 = scalar_lea.vmem %s4, %s1445
      $region48: #{conv3x3_bn_relu6.1} parent=43 // pred_fallthru
        _
    $region44: #{conv3x3_bn_relu6.1} parent=5 // pred_fallthru
      _
  $region6: #{conv3x3_bn_relu6.1} parent=0 // loop_footer
    %s14 = sadd.s32 1, %s10
  $region7: #{conv3x3_bn_relu6.1} parent=0 // loop_footer_branch
    %9 = sbr.rel target = $region3
  $region8: #{conv3x3_bn_relu6.1} parent=0 // loop_exit
    _

</llo_original>
